<compile_context>
chip_gen: v7x
topology: tpu7x:2x2x1
jax: 0.10.0
libtpu: 0.0.40
codegen_flags: <defaults>
</compile_context>

<pallas_src>
import functools

import jax
import jax.numpy as jnp
import numpy as np
from jax import lax
from jax.experimental import pallas as pl
from jax.experimental.pallas import tpu as pltpu


# ------------------------------ helpers ------------------------------------ #

def _round_up(x, m=128):
    return ((x + m - 1) // m) * m


def _pad_last(a, target):
    pad = target - a.shape[-1]
    if pad == 0:
        return a
    cfg = [(0, 0)] * (a.ndim - 1) + [(0, pad)]
    return jnp.pad(a, cfg)


def _pad_mat(w, rows, cols):
    return jnp.pad(w, ((0, rows - w.shape[0]), (0, cols - w.shape[1])))


# ------------------------------ fused kernel ------------------------------- #

def _fused_inverted_residual_kernel(*refs, stride, H, W, Ho, Wo, has_expand,
                                    use_res):
    if has_expand:
        (x_ref, w1_ref, s1_ref, b1_ref, wd_ref, sd_ref, bd_ref,
         w2_ref, s2_ref, b2_ref, o_ref) = refs[:11]
        scratch = refs[11:]
    else:
        (x_ref, wd_ref, sd_ref, bd_ref, w2_ref, s2_ref, b2_ref,
         o_ref) = refs[:8]
        scratch = refs[8:]
    hrows_ref = scratch[0]
    dwfull_ref = scratch[1] if stride == 2 else None

    # ---- stage 1: expand 1x1 conv + BN + ReLU (whole image -> M = H*W) ----
    x_img = x_ref[0].astype(jnp.float32)                       # (H, W, Cin_p)
    if has_expand:
        x2d = x_img.reshape(H * W, x_img.shape[-1])
        h2d = jnp.dot(x2d, w1_ref[...], preferred_element_type=jnp.float32)
        h2d = jnp.maximum(h2d * s1_ref[...] + b1_ref[...], 0.0)
        h = h2d.reshape(H, W, h2d.shape[-1])                    # (H, W, Ch_p)
    else:
        h = x_img
    ch = h.shape[-1]

    # ---- stage 2: H-padded hidden slab (only the 2 halo rows are zeroed) ----
    hrows_ref[pl.ds(0, 1)] = jnp.zeros((1, W, ch), jnp.float32)
    hrows_ref[pl.ds(H + 1, 1)] = jnp.zeros((1, W, ch), jnp.float32)
    hrows_ref[pl.ds(1, H)] = h

    # ---- stage 3: 3x3 depthwise conv + BN + ReLU ----
    wd = wd_ref[...].astype(jnp.float32)                        # (3, 3, ch), hoisted

    def row_comb(c):
        # sum over the 3 kernel rows for one kernel column, at output-row stride
        acc = None
        for dy in range(3):
            idx = pl.ds(dy, Ho) if stride == 1 else pl.ds(dy, Ho, stride)
            term = hrows_ref[idx] * wd[dy, c]
            acc = term if acc is None else acc + term
        return acc                                              # (Ho, W, ch)

    a_left, a_mid, a_right = row_comb(0), row_comb(1), row_comb(2)

    # +-1 column taps via XLU roll + edge mask (no W-padded / misaligned scratch)
    col = lax.broadcasted_iota(jnp.int32, (Ho, W, 1), 1)
    left_sh = jnp.where(col > 0, pltpu.roll(a_left, 1, axis=1), 0.0)        # h[.., x-1]
    right_sh = jnp.where(col < W - 1, pltpu.roll(a_right, W - 1, axis=1), 0.0)  # h[.., x+1]
    full = left_sh + a_mid + right_sh                           # conv at full W

    if stride == 1:
        acc = full                                              # Wo == W
    else:
        dwfull_ref[...] = full
        acc = dwfull_ref[:, pl.ds(0, Wo, stride), :]            # column subsample once

    hd = jnp.maximum(acc * sd_ref[...] + bd_ref[...], 0.0)      # (Ho, Wo, ch)

    # ---- stage 4: project 1x1 conv + BN (+ residual add) ----
    hd2d = hd.reshape(Ho * Wo, ch)
    out2d = jnp.dot(hd2d, w2_ref[...], preferred_element_type=jnp.float32)
    out2d = out2d * s2_ref[...] + b2_ref[...]
    if use_res:
        # stride == 1 and inp == oup here, so Ho*Wo == H*W and Cin_p == Co_p.
        out2d = out2d + x_img.reshape(H * W, x_img.shape[-1])
    o_ref[...] = out2d.reshape(1, Ho, Wo, out2d.shape[-1]).astype(o_ref.dtype)


# ------------------------------ wrappers ------------------------------------ #

def fused_inverted_residual_nhwc(x, params, *, stride, expand_ratio, oup):
    """NHWC-native fused InvertedResidual forward (inference-mode BN).

    Returns the 128-lane-padded output (N, Ho, Wo, Co_p) so that a chain of fused
    blocks can carry the padded layout HBM-side without per-block pad/slice copies.
    """
    assert stride in (1, 2)
    N, H, W, Cin = x.shape
    has_expand = expand_ratio != 1
    hidden = params["dw"][0].shape[-1]
    use_res = (stride == 1 and Cin == oup)

    Ho = (H + 2 - 3) // stride + 1
    Wo = (W + 2 - 3) // stride + 1

    Cin_p = _round_up(Cin)
    Ch_p = _round_up(hidden)
    Co_p = _round_up(oup)
    if use_res:
        assert Cin_p == Co_p

    # ---- one-time channel padding (lane-dense: multiples of 128) ----
    xp = _pad_last(x, Cin_p)
    wd, sd, bd = params["dw"]
    wd_p = _pad_last(wd, Ch_p)
    sd_p = _pad_last(sd, Ch_p).reshape(1, Ch_p)
    bd_p = _pad_last(bd, Ch_p).reshape(1, Ch_p)
    w2, s2, b2 = params["pw2"]
    w2_p = _pad_mat(w2, Ch_p, Co_p)
    s2_p = _pad_last(s2, Co_p).reshape(1, Co_p)
    b2_p = _pad_last(b2, Co_p).reshape(1, Co_p)

    args = [xp]
    in_specs = [pl.BlockSpec((1, H, W, Cin_p), lambda n: (n, 0, 0, 0))]
    if has_expand:
        w1, s1, b1 = params["pw1"]
        w1_p = _pad_mat(w1, Cin_p, Ch_p)
        s1_p = _pad_last(s1, Ch_p).reshape(1, Ch_p)
        b1_p = _pad_last(b1, Ch_p).reshape(1, Ch_p)
        args += [w1_p, s1_p, b1_p]
        in_specs += [
            pl.BlockSpec((Cin_p, Ch_p), lambda n: (0, 0)),
            pl.BlockSpec((1, Ch_p), lambda n: (0, 0)),
            pl.BlockSpec((1, Ch_p), lambda n: (0, 0)),
        ]
    args += [wd_p, sd_p, bd_p, w2_p, s2_p, b2_p]
    in_specs += [
        pl.BlockSpec((3, 3, Ch_p), lambda n: (0, 0, 0)),
        pl.BlockSpec((1, Ch_p), lambda n: (0, 0)),
        pl.BlockSpec((1, Ch_p), lambda n: (0, 0)),
        pl.BlockSpec((Ch_p, Co_p), lambda n: (0, 0)),
        pl.BlockSpec((1, Co_p), lambda n: (0, 0)),
        pl.BlockSpec((1, Co_p), lambda n: (0, 0)),
    ]

    kernel = functools.partial(
        _fused_inverted_residual_kernel,
        stride=stride, H=H, W=W, Ho=Ho, Wo=Wo,
        has_expand=has_expand, use_res=use_res)

    # Real (unpadded) FLOPs / bytes -- advisory only, but don't skew XLA heuristics.
    flops = 2 * N * Ho * Wo * hidden * (9 + oup)
    if has_expand:
        flops += 2 * N * H * W * Cin * hidden
    bytes_accessed = 4 * (N * H * W * Cin + N * Ho * Wo * oup
                          + (Cin * hidden if has_expand else 0)
                          + hidden * oup + 11 * hidden + 2 * oup)

    scratch_shapes = [pltpu.VMEM((H + 2, W, Ch_p), jnp.float32)]   # H-halo hidden slab
    if stride == 2:
        scratch_shapes.append(pltpu.VMEM((Ho, W, Ch_p), jnp.float32))  # full-W dw conv

    out_p = pl.pallas_call(
        kernel,
        out_shape=jax.ShapeDtypeStruct((N, Ho, Wo, Co_p), x.dtype),
        grid=(N,),
        in_specs=in_specs,
        out_specs=pl.BlockSpec((1, Ho, Wo, Co_p), lambda n: (n, 0, 0, 0)),
        scratch_shapes=scratch_shapes,
        compiler_params=pltpu.CompilerParams(
            dimension_semantics=("parallel",),
            vmem_limit_bytes=32 * 1024 * 1024),
        cost_estimate=pl.CostEstimate(flops=flops, transcendentals=0,
                                      bytes_accessed=bytes_accessed),
    )(*args)

    return out_p                      # padded; callers chaining blocks keep it as-is


def inverted_residual_forward(x_nchw, params, *, oup, stride, expand_ratio):
    """PyTorch-layout (NCHW) adapter.  The kernel is NHWC-native and carries a
    128-lane-padded channel axis; the transpose/pad/slice here exist only for
    single-block PyTorch parity."""
    # TODO(synk): `downsample` is None in this configuration; a non-None downsample
    # branch would be another JAX/Pallas callable whose output is added here.
    x = jnp.transpose(x_nchw, (0, 2, 3, 1))
    out_p = fused_inverted_residual_nhwc(x, params, stride=stride,
                                         expand_ratio=expand_ratio, oup=oup)
    return jnp.transpose(out_p[..., :oup], (0, 3, 1, 2))


# ------------------------------ parameters ---------------------------------- #

def fold_bn(gamma, beta, mean, var, eps=1e-5):
    scale = gamma / jnp.sqrt(var + eps)
    bias = beta - mean * scale
    return scale, bias


def init_params(key, inp, oup, expand_ratio):
    """Deterministic synthetic parameters matching the PyTorch module's shapes."""
    hidden = int(round(inp * expand_ratio))
    ks = list(jax.random.split(key, 12))

    def bn(k, c):
        k1, k2, k3, k4 = jax.random.split(k, 4)
        gamma = jax.random.uniform(k1, (c,), jnp.float32, 0.5, 1.5)
        beta = jax.random.normal(k2, (c,), jnp.float32) * 0.1
        mean = jax.random.normal(k3, (c,), jnp.float32) * 0.1
        var = jax.random.uniform(k4, (c,), jnp.float32, 0.5, 1.5)
        return fold_bn(gamma, beta, mean, var)

    params = {}
    if expand_ratio != 1:
        # expand 1x1 conv: PyTorch weight (hidden, inp, 1, 1) -> ours (inp, hidden)
        w1 = jax.random.normal(ks[0], (inp, hidden), jnp.float32) * 0.2
        params["pw1"] = (w1,) + bn(ks[1], hidden)
    # depthwise 3x3: PyTorch weight (hidden, 1, 3, 3) -> ours (3, 3, hidden)
    wd = jax.random.normal(ks[2], (3, 3, hidden), jnp.float32) * 0.2
    params["dw"] = (wd,) + bn(ks[3], hidden)
    # project 1x1 conv: PyTorch weight (oup, hidden, 1, 1) -> ours (hidden, oup)
    w2 = jax.random.normal(ks[4], (hidden, oup), jnp.float32) * 0.2
    params["pw2"] = (w2,) + bn(ks[5], oup)
    return params, hidden


# --------------------------- pure-JAX reference ------------------------------ #

def reference_forward(x_nchw, params, *, inp, oup, stride, expand_ratio):
    use_res_connect = (stride == 1 and inp == oup)
    x = jnp.transpose(x_nchw, (0, 2, 3, 1))
    h = x
    if expand_ratio != 1:
        w1, s1, b1 = params["pw1"]
        h = jnp.einsum("nhwc,cd->nhwd", h, w1) * s1 + b1
        h = jnp.maximum(h, 0.0)
    wd, sd, bd = params["dw"]
    C = wd.shape[-1]
    rhs = wd.reshape(3, 3, 1, C)  # HWIO with I=1, groups=C
    h = lax.conv_general_dilated(
        h, rhs, window_strides=(stride, stride), padding=[(1, 1), (1, 1)],
        dimension_numbers=("NHWC", "HWIO", "NHWC"), feature_group_count=C)
    h = jnp.maximum(h * sd + bd, 0.0)
    w2, s2, b2 = params["pw2"]
    out = jnp.einsum("nhwc,cd->nhwd", h, w2) * s2 + b2
    if use_res_connect:
        out = out + x
    return jnp.transpose(out, (0, 3, 1, 2))


# --------------------------------- main -------------------------------------- #

if __name__ == "__main__":
    # (inp, oup, stride, expand_ratio); first config is the primary residual block.
    configs = [
        (4, 4, 1, 6),   # stride 1, expand, residual connection
        (4, 8, 2, 6),   # stride 2, expand, no residual
        (4, 4, 1, 1),   # expand_ratio == 1 path, residual connection
    ]
    N, H, W = 2, 16, 16

    key = jax.random.PRNGKey(0)
    for inp, oup, stride, er in configs:
        kx, kp, key = jax.random.split(key, 3)
        x = jax.random.normal(kx, (N, inp, H, W), jnp.float32)   # NCHW like PyTorch
        params, hidden = init_params(kp, inp, oup, er)

        fwd = jax.jit(functools.partial(inverted_residual_forward, oup=oup,
                                        stride=stride, expand_ratio=er))
        out = jax.block_until_ready(fwd(x, params))

        ref = reference_forward(x, params, inp=inp, oup=oup, stride=stride,
                                expand_ratio=er)
        np.testing.assert_allclose(np.asarray(out), np.asarray(ref),
                                   rtol=1e-4, atol=1e-4)
        Ho = (H + 2 - 3) // stride + 1
        Wo = (W + 2 - 3) // stride + 1
        assert out.shape == (N, oup, Ho, Wo)

    print("KERNEL_OK")
</pallas_src>

<mosaic_0001>
module attributes {stable_mosaic.version = 11 : i64} {
  func.func @_fused_inverted_residual_kernel(%arg0: i32, %arg1: memref<1x16x16x128xf32, #tpu.memory_space<vmem>>, %arg2: memref<128x128xf32, #tpu.memory_space<vmem>>, %arg3: memref<1x128xf32, #tpu.memory_space<vmem>>, %arg4: memref<1x128xf32, #tpu.memory_space<vmem>>, %arg5: memref<3x3x128xf32, #tpu.memory_space<vmem>>, %arg6: memref<1x128xf32, #tpu.memory_space<vmem>>, %arg7: memref<1x128xf32, #tpu.memory_space<vmem>>, %arg8: memref<128x128xf32, #tpu.memory_space<vmem>>, %arg9: memref<1x128xf32, #tpu.memory_space<vmem>>, %arg10: memref<1x128xf32, #tpu.memory_space<vmem>>, %arg11: memref<1x16x16x128xf32, #tpu.memory_space<vmem>>, %arg12: memref<18x16x128xf32, #tpu.memory_space<vmem>>) attributes {dimension_semantics = [#tpu.dimension_semantics<parallel>], iteration_bounds = array<i64: 2>, scalar_prefetch = 0 : i64, scratch_operands = 1 : i64, tpu.core_type = #tpu.core_type<tc>, window_params = [{transform_indices = @transform_0, window_bounds = array<i64: 1, 16, 16, 128>}, {pipeline_mode = #tpu.pipeline_mode<synchronous>, transform_indices = @transform_1, window_bounds = array<i64: 128, 128>}, {pipeline_mode = #tpu.pipeline_mode<synchronous>, transform_indices = @transform_2, window_bounds = array<i64: 1, 128>}, {pipeline_mode = #tpu.pipeline_mode<synchronous>, transform_indices = @transform_3, window_bounds = array<i64: 1, 128>}, {pipeline_mode = #tpu.pipeline_mode<synchronous>, transform_indices = @transform_4, window_bounds = array<i64: 3, 3, 128>}, {pipeline_mode = #tpu.pipeline_mode<synchronous>, transform_indices = @transform_5, window_bounds = array<i64: 1, 128>}, {pipeline_mode = #tpu.pipeline_mode<synchronous>, transform_indices = @transform_6, window_bounds = array<i64: 1, 128>}, {pipeline_mode = #tpu.pipeline_mode<synchronous>, transform_indices = @transform_7, window_bounds = array<i64: 128, 128>}, {pipeline_mode = #tpu.pipeline_mode<synchronous>, transform_indices = @transform_8, window_bounds = array<i64: 1, 128>}, {pipeline_mode = #tpu.pipeline_mode<synchronous>, transform_indices = @transform_9, window_bounds = array<i64: 1, 128>}, {transform_indices = @transform_10, window_bounds = array<i64: 1, 16, 16, 128>}]} {
    %c0 = arith.constant 0 : index
    %c0_0 = arith.constant 0 : index
    %c0_1 = arith.constant 0 : index
    %c0_2 = arith.constant 0 : index
    %0 = vector.load %arg1[%c0, %c0_0, %c0_1, %c0_2] : memref<1x16x16x128xf32, #tpu.memory_space<vmem>>, vector<1x16x16x128xf32>
    %1 = vector.shape_cast %0 : vector<1x16x16x128xf32> to vector<16x16x128xf32>
    %2 = vector.shape_cast %1 : vector<16x16x128xf32> to vector<256x128xf32>
    %c0_3 = arith.constant 0 : index
    %c0_4 = arith.constant 0 : index
    %3 = vector.load %arg2[%c0_3, %c0_4] : memref<128x128xf32, #tpu.memory_space<vmem>>, vector<128x128xf32>
    %cst = arith.constant dense<0.000000e+00> : vector<256x128xf32>
    %4 = tpu.matmul %2, %3, %cst {dimension_numbers = #tpu.dot_dimension_numbers<[1], [0], [0], [1], [0, 0, 1, 1], [], []>} : vector<256x128xf32>, vector<128x128xf32>, vector<256x128xf32> -> vector<256x128xf32>
    %c0_5 = arith.constant 0 : index
    %c0_6 = arith.constant 0 : index
    %5 = vector.load %arg3[%c0_5, %c0_6] : memref<1x128xf32, #tpu.memory_space<vmem>>, vector<1x128xf32>
    %6 = vector.broadcast %5 : vector<1x128xf32> to vector<256x128xf32>
    %7 = arith.mulf %4, %6 : vector<256x128xf32>
    %c0_7 = arith.constant 0 : index
    %c0_8 = arith.constant 0 : index
    %8 = vector.load %arg4[%c0_7, %c0_8] : memref<1x128xf32, #tpu.memory_space<vmem>>, vector<1x128xf32>
    %9 = vector.broadcast %8 : vector<1x128xf32> to vector<256x128xf32>
    %10 = arith.addf %7, %9 : vector<256x128xf32>
    %cst_9 = arith.constant 0.000000e+00 : f32
    %11 = vector.broadcast %cst_9 : f32 to vector<256x128xf32>
    %12 = arith.maximumf %10, %11 : vector<256x128xf32>
    %13 = vector.shape_cast %12 : vector<256x128xf32> to vector<16x16x128xf32>
    %cst_10 = arith.constant 0.000000e+00 : f32
    %14 = vector.broadcast %cst_10 : f32 to vector<1x16x128xf32>
    %c0_11 = arith.constant 0 : index
    %c0_12 = arith.constant 0 : index
    %c0_13 = arith.constant 0 : index
    %15 = vector.load %arg12[%c0_11, %c0_12, %c0_13] : memref<18x16x128xf32, #tpu.memory_space<vmem>>, vector<1x16x128xf32>
    tpu.vector_store %arg12[%c0_11, %c0_12, %c0_13], %14 {strides = array<i32>} : memref<18x16x128xf32, #tpu.memory_space<vmem>>, vector<1x16x128xf32>,
    %cst_14 = arith.constant 0.000000e+00 : f32
    %16 = vector.broadcast %cst_14 : f32 to vector<1x16x128xf32>
    %c17 = arith.constant 17 : index
    %c0_15 = arith.constant 0 : index
    %c0_16 = arith.constant 0 : index
    %17 = vector.load %arg12[%c17, %c0_15, %c0_16] : memref<18x16x128xf32, #tpu.memory_space<vmem>>, vector<1x16x128xf32>
    tpu.vector_store %arg12[%c17, %c0_15, %c0_16], %16 {strides = array<i32>} : memref<18x16x128xf32, #tpu.memory_space<vmem>>, vector<1x16x128xf32>,
    %c1 = arith.constant 1 : index
    %c0_17 = arith.constant 0 : index
    %c0_18 = arith.constant 0 : index
    %18 = vector.load %arg12[%c1, %c0_17, %c0_18] : memref<18x16x128xf32, #tpu.memory_space<vmem>>, vector<16x16x128xf32>
    tpu.vector_store %arg12[%c1, %c0_17, %c0_18], %13 {strides = array<i32>} : memref<18x16x128xf32, #tpu.memory_space<vmem>>, vector<16x16x128xf32>,
    %c0_19 = arith.constant 0 : index
    %c0_20 = arith.constant 0 : index
    %c0_21 = arith.constant 0 : index
    %19 = vector.load %arg5[%c0_19, %c0_20, %c0_21] : memref<3x3x128xf32, #tpu.memory_space<vmem>>, vector<3x3x128xf32>
    %c0_22 = arith.constant 0 : index
    %c0_23 = arith.constant 0 : index
    %c0_24 = arith.constant 0 : index
    %20 = vector.load %arg12[%c0_22, %c0_23, %c0_24] : memref<18x16x128xf32, #tpu.memory_space<vmem>>, vector<16x16x128xf32>
    %21 = vector.extract_strided_slice %19 {offsets = [0, 0, 0], sizes = [1, 1, 128], strides = [1, 1, 1]} : vector<3x3x128xf32> to vector<1x1x128xf32>
    %22 = vector.shape_cast %21 : vector<1x1x128xf32> to vector<128xf32>
    %23 = vector.shape_cast %22 : vector<128xf32> to vector<1x1x128xf32>
    %24 = vector.broadcast %23 : vector<1x1x128xf32> to vector<16x16x128xf32>
    %25 = arith.mulf %20, %24 : vector<16x16x128xf32>
    %c1_25 = arith.constant 1 : index
    %c0_26 = arith.constant 0 : index
    %c0_27 = arith.constant 0 : index
    %26 = vector.load %arg12[%c1_25, %c0_26, %c0_27] : memref<18x16x128xf32, #tpu.memory_space<vmem>>, vector<16x16x128xf32>
    %27 = vector.extract_strided_slice %19 {offsets = [1, 0, 0], sizes = [1, 1, 128], strides = [1, 1, 1]} : vector<3x3x128xf32> to vector<1x1x128xf32>
    %28 = vector.shape_cast %27 : vector<1x1x128xf32> to vector<128xf32>
    %29 = vector.shape_cast %28 : vector<128xf32> to vector<1x1x128xf32>
    %30 = vector.broadcast %29 : vector<1x1x128xf32> to vector<16x16x128xf32>
    %31 = arith.mulf %26, %30 : vector<16x16x128xf32>
    %32 = arith.addf %25, %31 : vector<16x16x128xf32>
    %c2 = arith.constant 2 : index
    %c0_28 = arith.constant 0 : index
    %c0_29 = arith.constant 0 : index
    %33 = vector.load %arg12[%c2, %c0_28, %c0_29] : memref<18x16x128xf32, #tpu.memory_space<vmem>>, vector<16x16x128xf32>
    %34 = vector.extract_strided_slice %19 {offsets = [2, 0, 0], sizes = [1, 1, 128], strides = [1, 1, 1]} : vector<3x3x128xf32> to vector<1x1x128xf32>
    %35 = vector.shape_cast %34 : vector<1x1x128xf32> to vector<128xf32>
    %36 = vector.shape_cast %35 : vector<128xf32> to vector<1x1x128xf32>
    %37 = vector.broadcast %36 : vector<1x1x128xf32> to vector<16x16x128xf32>
    %38 = arith.mulf %33, %37 : vector<16x16x128xf32>
    %39 = arith.addf %32, %38 : vector<16x16x128xf32>
    %c0_30 = arith.constant 0 : index
    %c0_31 = arith.constant 0 : index
    %c0_32 = arith.constant 0 : index
    %40 = vector.load %arg12[%c0_30, %c0_31, %c0_32] : memref<18x16x128xf32, #tpu.memory_space<vmem>>, vector<16x16x128xf32>
    %41 = vector.extract_strided_slice %19 {offsets = [0, 1, 0], sizes = [1, 1, 128], strides = [1, 1, 1]} : vector<3x3x128xf32> to vector<1x1x128xf32>
    %42 = vector.shape_cast %41 : vector<1x1x128xf32> to vector<128xf32>
    %43 = vector.shape_cast %42 : vector<128xf32> to vector<1x1x128xf32>
    %44 = vector.broadcast %43 : vector<1x1x128xf32> to vector<16x16x128xf32>
    %45 = arith.mulf %40, %44 : vector<16x16x128xf32>
    %c1_33 = arith.constant 1 : index
    %c0_34 = arith.constant 0 : index
    %c0_35 = arith.constant 0 : index
    %46 = vector.load %arg12[%c1_33, %c0_34, %c0_35] : memref<18x16x128xf32, #tpu.memory_space<vmem>>, vector<16x16x128xf32>
    %47 = vector.extract_strided_slice %19 {offsets = [1, 1, 0], sizes = [1, 1, 128], strides = [1, 1, 1]} : vector<3x3x128xf32> to vector<1x1x128xf32>
    %48 = vector.shape_cast %47 : vector<1x1x128xf32> to vector<128xf32>
    %49 = vector.shape_cast %48 : vector<128xf32> to vector<1x1x128xf32>
    %50 = vector.broadcast %49 : vector<1x1x128xf32> to vector<16x16x128xf32>
    %51 = arith.mulf %46, %50 : vector<16x16x128xf32>
    %52 = arith.addf %45, %51 : vector<16x16x128xf32>
    %c2_36 = arith.constant 2 : index
    %c0_37 = arith.constant 0 : index
    %c0_38 = arith.constant 0 : index
    %53 = vector.load %arg12[%c2_36, %c0_37, %c0_38] : memref<18x16x128xf32, #tpu.memory_space<vmem>>, vector<16x16x128xf32>
    %54 = vector.extract_strided_slice %19 {offsets = [2, 1, 0], sizes = [1, 1, 128], strides = [1, 1, 1]} : vector<3x3x128xf32> to vector<1x1x128xf32>
    %55 = vector.shape_cast %54 : vector<1x1x128xf32> to vector<128xf32>
    %56 = vector.shape_cast %55 : vector<128xf32> to vector<1x1x128xf32>
    %57 = vector.broadcast %56 : vector<1x1x128xf32> to vector<16x16x128xf32>
    %58 = arith.mulf %53, %57 : vector<16x16x128xf32>
    %59 = arith.addf %52, %58 : vector<16x16x128xf32>
    %c0_39 = arith.constant 0 : index
    %c0_40 = arith.constant 0 : index
    %c0_41 = arith.constant 0 : index
    %60 = vector.load %arg12[%c0_39, %c0_40, %c0_41] : memref<18x16x128xf32, #tpu.memory_space<vmem>>, vector<16x16x128xf32>
    %61 = vector.extract_strided_slice %19 {offsets = [0, 2, 0], sizes = [1, 1, 128], strides = [1, 1, 1]} : vector<3x3x128xf32> to vector<1x1x128xf32>
    %62 = vector.shape_cast %61 : vector<1x1x128xf32> to vector<128xf32>
    %63 = vector.shape_cast %62 : vector<128xf32> to vector<1x1x128xf32>
    %64 = vector.broadcast %63 : vector<1x1x128xf32> to vector<16x16x128xf32>
    %65 = arith.mulf %60, %64 : vector<16x16x128xf32>
    %c1_42 = arith.constant 1 : index
    %c0_43 = arith.constant 0 : index
    %c0_44 = arith.constant 0 : index
    %66 = vector.load %arg12[%c1_42, %c0_43, %c0_44] : memref<18x16x128xf32, #tpu.memory_space<vmem>>, vector<16x16x128xf32>
    %67 = vector.extract_strided_slice %19 {offsets = [1, 2, 0], sizes = [1, 1, 128], strides = [1, 1, 1]} : vector<3x3x128xf32> to vector<1x1x128xf32>
    %68 = vector.shape_cast %67 : vector<1x1x128xf32> to vector<128xf32>
    %69 = vector.shape_cast %68 : vector<128xf32> to vector<1x1x128xf32>
    %70 = vector.broadcast %69 : vector<1x1x128xf32> to vector<16x16x128xf32>
    %71 = arith.mulf %66, %70 : vector<16x16x128xf32>
    %72 = arith.addf %65, %71 : vector<16x16x128xf32>
    %c2_45 = arith.constant 2 : index
    %c0_46 = arith.constant 0 : index
    %c0_47 = arith.constant 0 : index
    %73 = vector.load %arg12[%c2_45, %c0_46, %c0_47] : memref<18x16x128xf32, #tpu.memory_space<vmem>>, vector<16x16x128xf32>
    %74 = vector.extract_strided_slice %19 {offsets = [2, 2, 0], sizes = [1, 1, 128], strides = [1, 1, 1]} : vector<3x3x128xf32> to vector<1x1x128xf32>
    %75 = vector.shape_cast %74 : vector<1x1x128xf32> to vector<128xf32>
    %76 = vector.shape_cast %75 : vector<128xf32> to vector<1x1x128xf32>
    %77 = vector.broadcast %76 : vector<1x1x128xf32> to vector<16x16x128xf32>
    %78 = arith.mulf %73, %77 : vector<16x16x128xf32>
    %79 = arith.addf %72, %78 : vector<16x16x128xf32>
    %80 = tpu.iota {dimensions = array<i32: 1>} : vector<16x16x1xi32>
    %c0_i32 = arith.constant 0 : i32
    %81 = vector.broadcast %c0_i32 : i32 to vector<16x16x1xi32>
    %82 = arith.cmpi sgt, %80, %81 : vector<16x16x1xi32>
    %c1_i32 = arith.constant 1 : i32
    %83 = tpu.dynamic_rotate %39 by %c1_i32 dim 1 : vector<16x16x128xf32>, i32 -> vector<16x16x128xf32>
    %cst_48 = arith.constant 0.000000e+00 : f32
    %84 = vector.shape_cast %82 : vector<16x16x1xi1> to vector<16x16x1xi1>
    %85 = vector.broadcast %84 : vector<16x16x1xi1> to vector<16x16x128xi1>
    %86 = vector.broadcast %cst_48 : f32 to vector<16x16x128xf32>
    %87 = arith.select %85, %83, %86 : vector<16x16x128xi1>, vector<16x16x128xf32>
    %c15_i32 = arith.constant 15 : i32
    %88 = vector.broadcast %c15_i32 : i32 to vector<16x16x1xi32>
    %89 = arith.cmpi slt, %80, %88 : vector<16x16x1xi32>
    %c15_i32_49 = arith.constant 15 : i32
    %90 = tpu.dynamic_rotate %79 by %c15_i32_49 dim 1 : vector<16x16x128xf32>, i32 -> vector<16x16x128xf32>
    %cst_50 = arith.constant 0.000000e+00 : f32
    %91 = vector.shape_cast %89 : vector<16x16x1xi1> to vector<16x16x1xi1>
    %92 = vector.broadcast %91 : vector<16x16x1xi1> to vector<16x16x128xi1>
    %93 = vector.broadcast %cst_50 : f32 to vector<16x16x128xf32>
    %94 = arith.select %92, %90, %93 : vector<16x16x128xi1>, vector<16x16x128xf32>
    %95 = arith.addf %87, %59 : vector<16x16x128xf32>
    %96 = arith.addf %95, %94 : vector<16x16x128xf32>
    %c0_51 = arith.constant 0 : index
    %c0_52 = arith.constant 0 : index
    %97 = vector.load %arg6[%c0_51, %c0_52] : memref<1x128xf32, #tpu.memory_space<vmem>>, vector<1x128xf32>
    %98 = vector.shape_cast %97 : vector<1x128xf32> to vector<1x1x128xf32>
    %99 = vector.broadcast %98 : vector<1x1x128xf32> to vector<16x16x128xf32>
    %100 = arith.mulf %96, %99 : vector<16x16x128xf32>
    %c0_53 = arith.constant 0 : index
    %c0_54 = arith.constant 0 : index
    %101 = vector.load %arg7[%c0_53, %c0_54] : memref<1x128xf32, #tpu.memory_space<vmem>>, vector<1x128xf32>
    %102 = vector.shape_cast %101 : vector<1x128xf32> to vector<1x1x128xf32>
    %103 = vector.broadcast %102 : vector<1x1x128xf32> to vector<16x16x128xf32>
    %104 = arith.addf %100, %103 : vector<16x16x128xf32>
    %cst_55 = arith.constant 0.000000e+00 : f32
    %105 = vector.broadcast %cst_55 : f32 to vector<16x16x128xf32>
    %106 = arith.maximumf %104, %105 : vector<16x16x128xf32>
    %107 = vector.shape_cast %106 : vector<16x16x128xf32> to vector<256x128xf32>
    %c0_56 = arith.constant 0 : index
    %c0_57 = arith.constant 0 : index
    %108 = vector.load %arg8[%c0_56, %c0_57] : memref<128x128xf32, #tpu.memory_space<vmem>>, vector<128x128xf32>
    %cst_58 = arith.constant dense<0.000000e+00> : vector<256x128xf32>
    %109 = tpu.matmul %107, %108, %cst_58 {dimension_numbers = #tpu.dot_dimension_numbers<[1], [0], [0], [1], [0, 0, 1, 1], [], []>} : vector<256x128xf32>, vector<128x128xf32>, vector<256x128xf32> -> vector<256x128xf32>
    %c0_59 = arith.constant 0 : index
    %c0_60 = arith.constant 0 : index
    %110 = vector.load %arg9[%c0_59, %c0_60] : memref<1x128xf32, #tpu.memory_space<vmem>>, vector<1x128xf32>
    %111 = vector.broadcast %110 : vector<1x128xf32> to vector<256x128xf32>
    %112 = arith.mulf %109, %111 : vector<256x128xf32>
    %c0_61 = arith.constant 0 : index
    %c0_62 = arith.constant 0 : index
    %113 = vector.load %arg10[%c0_61, %c0_62] : memref<1x128xf32, #tpu.memory_space<vmem>>, vector<1x128xf32>
    %114 = vector.broadcast %113 : vector<1x128xf32> to vector<256x128xf32>
    %115 = arith.addf %112, %114 : vector<256x128xf32>
    %116 = vector.shape_cast %1 : vector<16x16x128xf32> to vector<256x128xf32>
    %117 = arith.addf %115, %116 : vector<256x128xf32>
    %118 = vector.shape_cast %117 : vector<256x128xf32> to vector<1x16x16x128xf32>
    %c0_63 = arith.constant 0 : index
    %c0_64 = arith.constant 0 : index
    %c0_65 = arith.constant 0 : index
    %c0_66 = arith.constant 0 : index
    %119 = vector.load %arg11[%c0_63, %c0_64, %c0_65, %c0_66] : memref<1x16x16x128xf32, #tpu.memory_space<vmem>>, vector<1x16x16x128xf32>
    tpu.vector_store %arg11[%c0_63, %c0_64, %c0_65, %c0_66], %118 {strides = array<i32>} : memref<1x16x16x128xf32, #tpu.memory_space<vmem>>, vector<1x16x16x128xf32>,
    return
  }
  func.func @transform_0(%arg0: i32) -> (i32, i32, i32, i32) {
    %c0_i32 = arith.constant 0 : i32
    %c0_i32_0 = arith.constant 0 : i32
    %c0_i32_1 = arith.constant 0 : i32
    %c0_i32_2 = arith.constant 0 : i32
    return %arg0, %c0_i32, %c0_i32_0, %c0_i32_1 : i32, i32, i32, i32
  }
  func.func @transform_1(%arg0: i32) -> (i32, i32) {
    %c0_i32 = arith.constant 0 : i32
    %c0_i32_0 = arith.constant 0 : i32
    %c0_i32_1 = arith.constant 0 : i32
    return %c0_i32, %c0_i32_0 : i32, i32
  }
  func.func @transform_2(%arg0: i32) -> (i32, i32) {
    %c0_i32 = arith.constant 0 : i32
    %c0_i32_0 = arith.constant 0 : i32
    %c0_i32_1 = arith.constant 0 : i32
    return %c0_i32, %c0_i32_0 : i32, i32
  }
  func.func @transform_3(%arg0: i32) -> (i32, i32) {
    %c0_i32 = arith.constant 0 : i32
    %c0_i32_0 = arith.constant 0 : i32
    %c0_i32_1 = arith.constant 0 : i32
    return %c0_i32, %c0_i32_0 : i32, i32
  }
  func.func @transform_4(%arg0: i32) -> (i32, i32, i32) {
    %c0_i32 = arith.constant 0 : i32
    %c0_i32_0 = arith.constant 0 : i32
    %c0_i32_1 = arith.constant 0 : i32
    %c0_i32_2 = arith.constant 0 : i32
    return %c0_i32, %c0_i32_0, %c0_i32_1 : i32, i32, i32
  }
  func.func @transform_5(%arg0: i32) -> (i32, i32) {
    %c0_i32 = arith.constant 0 : i32
    %c0_i32_0 = arith.constant 0 : i32
    %c0_i32_1 = arith.constant 0 : i32
    return %c0_i32, %c0_i32_0 : i32, i32
  }
  func.func @transform_6(%arg0: i32) -> (i32, i32) {
    %c0_i32 = arith.constant 0 : i32
    %c0_i32_0 = arith.constant 0 : i32
    %c0_i32_1 = arith.constant 0 : i32
    return %c0_i32, %c0_i32_0 : i32, i32
  }
  func.func @transform_7(%arg0: i32) -> (i32, i32) {
    %c0_i32 = arith.constant 0 : i32
    %c0_i32_0 = arith.constant 0 : i32
    %c0_i32_1 = arith.constant 0 : i32
    return %c0_i32, %c0_i32_0 : i32, i32
  }
  func.func @transform_8(%arg0: i32) -> (i32, i32) {
    %c0_i32 = arith.constant 0 : i32
    %c0_i32_0 = arith.constant 0 : i32
    %c0_i32_1 = arith.constant 0 : i32
    return %c0_i32, %c0_i32_0 : i32, i32
  }
  func.func @transform_9(%arg0: i32) -> (i32, i32) {
    %c0_i32 = arith.constant 0 : i32
    %c0_i32_0 = arith.constant 0 : i32
    %c0_i32_1 = arith.constant 0 : i32
    return %c0_i32, %c0_i32_0 : i32, i32
  }
  func.func @transform_10(%arg0: i32) -> (i32, i32, i32, i32) {
    %c0_i32 = arith.constant 0 : i32
    %c0_i32_0 = arith.constant 0 : i32
    %c0_i32_1 = arith.constant 0 : i32
    %c0_i32_2 = arith.constant 0 : i32
    return %arg0, %c0_i32, %c0_i32_0, %c0_i32_1 : i32, i32, i32, i32
  }
}

</mosaic_0001>

<llo_original>
// kernel: inverted_residual_forward.1
$region0: #{inverted_residual_forward.1}
  #allocation0 [shape = 'u32[]', space=smem, size = 0x4, offset = 0x4, fixed_abs, tag = 'smem constant byte address 0x4 - core index']
  #allocation1 [shape = 'u32[144,128]{1,0:T(1,128)}', space=vmem, size = 0x12000, scoped, tag = 'internal scratch']
  #allocation2 [shape = 'f32[18,16,128]{2,1,0:T(8,128)}', space=vmem, size = 0x24000, scoped, tag = 'scratch operand']
  %s0 = inlined_call_operand.vmem [shape: f32[2,16,16,128], index: 0, kind: input, shape index: {}]
  %s1 = inlined_call_operand.vmem [shape: f32[128,128], index: 1, kind: input, shape index: {}]
  %s2 = inlined_call_operand.vmem [shape: f32[1,128], index: 2, kind: input, shape index: {}]
  %s3 = inlined_call_operand.vmem [shape: f32[1,128], index: 3, kind: input, shape index: {}]
  %s4 = inlined_call_operand.vmem [shape: f32[3,3,128], index: 4, kind: input, shape index: {}]
  %s5 = inlined_call_operand.vmem [shape: f32[1,128], index: 5, kind: input, shape index: {}]
  %s6 = inlined_call_operand.vmem [shape: f32[1,128], index: 6, kind: input, shape index: {}]
  %s7 = inlined_call_operand.vmem [shape: f32[128,128], index: 7, kind: input, shape index: {}]
  %s8 = inlined_call_operand.vmem [shape: f32[1,128], index: 8, kind: input, shape index: {}]
  %s9 = inlined_call_operand.vmem [shape: f32[1,128], index: 9, kind: input, shape index: {}]
  %s10 = inlined_call_operand.vmem [shape: f32[2,16,16,128], index: 10, kind: output, shape index: {}]
  %s11 = sld [smem:[#allocation0]]
  $region73: #{inverted_residual_forward.1} parent=0
    _
  %s13 = ssub.s32 1, %s11
  %s14 = scalar_select 0, %s13, %s11
  loop: start=0, step=1, limit=4
  $region2: #{inverted_residual_forward.1} parent=0 // loop_pre_header
    _
  $region3: #{inverted_residual_forward.1} parent=0 // loop_header
    %s16 = sphi 0, %s20
    %p17 = scmp.ge.s32.totalorder %s16, 4
    %s26 = sphi 0, %s28
    %s29 = sphi 0, %s26
    %s30 = sphi 0, %s29
    %s46 = sphi 0, %s30
    %s50 = sphi 0, %s50
    %s52 = sphi 0, %s50
    %s53 = sphi 0, %s52
    %s67 = sphi 0, %s53
    %s71 = sphi 0, %s71
    %s73 = sphi 0, %s71
    %s74 = sphi 0, %s73
    %s88 = sphi 0, %s74
    %s92 = sphi 0, %s92
    %s94 = sphi 0, %s92
    %s95 = sphi 0, %s94
    %s109 = sphi 0, %s95
    %s113 = sphi 0, %s113
    %s115 = sphi 0, %s113
    %s116 = sphi 0, %s115
    %s130 = sphi 0, %s116
    %s134 = sphi 0, %s134
    %s136 = sphi 0, %s134
    %s137 = sphi 0, %s136
    %s151 = sphi 0, %s137
    %s155 = sphi 0, %s155
    %s157 = sphi 0, %s155
    %s158 = sphi 0, %s157
    %s172 = sphi 0, %s158
    %s176 = sphi 0, %s176
    %s178 = sphi 0, %s176
    %s179 = sphi 0, %s178
    %s193 = sphi 0, %s179
    %s197 = sphi 0, %s197
    %s199 = sphi 0, %s197
    %s200 = sphi 0, %s199
    %s214 = sphi 0, %s200
    %s218 = sphi 0, %s218
    %s220 = sphi 0, %s218
    %s221 = sphi 0, %s220
    %s235 = sphi 0, %s221
    %s241 = sphi 0, %s243
    %s244 = sphi 0, %s241
    %s245 = sphi 0, %s244
    %s261 = sphi 0, %s245
  $region4: #{inverted_residual_forward.1} parent=0 // loop_header_branch
    %19 = sbr.rel (%p17) target = $region8
  $region5: #{inverted_residual_forward.1} parent=0 // loop_body
    %s21 = ssub.s32 %s16, 1
    %s22 = ssub.s32 %s16, 2
    %s23 = sadd.s32 %s16, 1
    %s24 = ssub.s32 %s16, %s23
    %p25 = scmp.eq.s32.totalorder %s24, 0
    %s27 = sadd.s32 %s26, 1
    %s28 = scalar_select %p25, %s26, %s27
    %p31 = pneg %p25
    %p32 = scmp.eq.s32.totalorder %s16, 1
    %p33 = por %p31, %p32
    %p34 = scmp.ne.s32.totalorder %s26, %s29
    %p35 = scmp.eq.s32.totalorder %s16, 0
    %p36 = por %p34, %p35
    %p37 = scmp.ne.s32.totalorder %s26, %s29
    %p38 = scmp.eq.s32.totalorder %s21, 1
    %p39 = por %p37, %p38
    %p40 = scmp.ne.s32.totalorder %s29, %s30
    %p41 = scmp.eq.s32.totalorder %s21, 0
    %p42 = por %p40, %p41
    %p43 = scmp.ne.s32.totalorder %s29, %s30
    %p44 = scmp.eq.s32.totalorder %s22, 1
    %p45 = por %p43, %p44
    %p47 = scmp.ne.s32.totalorder %s30, %s46
    %p48 = scmp.eq.s32.totalorder %s22, 0
    %p49 = por %p47, %p48
    %s51 = sadd.s32 %s50, 1
    %p54 = scmp.eq.s32.totalorder %s16, 1
    %p55 = scmp.ne.s32.totalorder %s50, %s52
    %p56 = scmp.eq.s32.totalorder %s16, 0
    %p57 = por %p55, %p56
    %p58 = scmp.ne.s32.totalorder %s50, %s52
    %p59 = scmp.eq.s32.totalorder %s21, 1
    %p60 = por %p58, %p59
    %p61 = scmp.ne.s32.totalorder %s52, %s53
    %p62 = scmp.eq.s32.totalorder %s21, 0
    %p63 = por %p61, %p62
    %p64 = scmp.ne.s32.totalorder %s52, %s53
    %p65 = scmp.eq.s32.totalorder %s22, 1
    %p66 = por %p64, %p65
    %p68 = scmp.ne.s32.totalorder %s53, %s67
    %p69 = scmp.eq.s32.totalorder %s22, 0
    %p70 = por %p68, %p69
    %s72 = sadd.s32 %s71, 1
    %p75 = scmp.eq.s32.totalorder %s16, 1
    %p76 = scmp.ne.s32.totalorder %s71, %s73
    %p77 = scmp.eq.s32.totalorder %s16, 0
    %p78 = por %p76, %p77
    %p79 = scmp.ne.s32.totalorder %s71, %s73
    %p80 = scmp.eq.s32.totalorder %s21, 1
    %p81 = por %p79, %p80
    %p82 = scmp.ne.s32.totalorder %s73, %s74
    %p83 = scmp.eq.s32.totalorder %s21, 0
    %p84 = por %p82, %p83
    %p85 = scmp.ne.s32.totalorder %s73, %s74
    %p86 = scmp.eq.s32.totalorder %s22, 1
    %p87 = por %p85, %p86
    %p89 = scmp.ne.s32.totalorder %s74, %s88
    %p90 = scmp.eq.s32.totalorder %s22, 0
    %p91 = por %p89, %p90
    %s93 = sadd.s32 %s92, 1
    %p96 = scmp.eq.s32.totalorder %s16, 1
    %p97 = scmp.ne.s32.totalorder %s92, %s94
    %p98 = scmp.eq.s32.totalorder %s16, 0
    %p99 = por %p97, %p98
    %p100 = scmp.ne.s32.totalorder %s92, %s94
    %p101 = scmp.eq.s32.totalorder %s21, 1
    %p102 = por %p100, %p101
    %p103 = scmp.ne.s32.totalorder %s94, %s95
    %p104 = scmp.eq.s32.totalorder %s21, 0
    %p105 = por %p103, %p104
    %p106 = scmp.ne.s32.totalorder %s94, %s95
    %p107 = scmp.eq.s32.totalorder %s22, 1
    %p108 = por %p106, %p107
    %p110 = scmp.ne.s32.totalorder %s95, %s109
    %p111 = scmp.eq.s32.totalorder %s22, 0
    %p112 = por %p110, %p111
    %s114 = sadd.s32 %s113, 1
    %p117 = scmp.eq.s32.totalorder %s16, 1
    %p118 = scmp.ne.s32.totalorder %s113, %s115
    %p119 = scmp.eq.s32.totalorder %s16, 0
    %p120 = por %p118, %p119
    %p121 = scmp.ne.s32.totalorder %s113, %s115
    %p122 = scmp.eq.s32.totalorder %s21, 1
    %p123 = por %p121, %p122
    %p124 = scmp.ne.s32.totalorder %s115, %s116
    %p125 = scmp.eq.s32.totalorder %s21, 0
    %p126 = por %p124, %p125
    %p127 = scmp.ne.s32.totalorder %s115, %s116
    %p128 = scmp.eq.s32.totalorder %s22, 1
    %p129 = por %p127, %p128
    %p131 = scmp.ne.s32.totalorder %s116, %s130
    %p132 = scmp.eq.s32.totalorder %s22, 0
    %p133 = por %p131, %p132
    %s135 = sadd.s32 %s134, 1
    %p138 = scmp.eq.s32.totalorder %s16, 1
    %p139 = scmp.ne.s32.totalorder %s134, %s136
    %p140 = scmp.eq.s32.totalorder %s16, 0
    %p141 = por %p139, %p140
    %p142 = scmp.ne.s32.totalorder %s134, %s136
    %p143 = scmp.eq.s32.totalorder %s21, 1
    %p144 = por %p142, %p143
    %p145 = scmp.ne.s32.totalorder %s136, %s137
    %p146 = scmp.eq.s32.totalorder %s21, 0
    %p147 = por %p145, %p146
    %p148 = scmp.ne.s32.totalorder %s136, %s137
    %p149 = scmp.eq.s32.totalorder %s22, 1
    %p150 = por %p148, %p149
    %p152 = scmp.ne.s32.totalorder %s137, %s151
    %p153 = scmp.eq.s32.totalorder %s22, 0
    %p154 = por %p152, %p153
    %s156 = sadd.s32 %s155, 1
    %p159 = scmp.eq.s32.totalorder %s16, 1
    %p160 = scmp.ne.s32.totalorder %s155, %s157
    %p161 = scmp.eq.s32.totalorder %s16, 0
    %p162 = por %p160, %p161
    %p163 = scmp.ne.s32.totalorder %s155, %s157
    %p164 = scmp.eq.s32.totalorder %s21, 1
    %p165 = por %p163, %p164
    %p166 = scmp.ne.s32.totalorder %s157, %s158
    %p167 = scmp.eq.s32.totalorder %s21, 0
    %p168 = por %p166, %p167
    %p169 = scmp.ne.s32.totalorder %s157, %s158
    %p170 = scmp.eq.s32.totalorder %s22, 1
    %p171 = por %p169, %p170
    %p173 = scmp.ne.s32.totalorder %s158, %s172
    %p174 = scmp.eq.s32.totalorder %s22, 0
    %p175 = por %p173, %p174
    %s177 = sadd.s32 %s176, 1
    %p180 = scmp.eq.s32.totalorder %s16, 1
    %p181 = scmp.ne.s32.totalorder %s176, %s178
    %p182 = scmp.eq.s32.totalorder %s16, 0
    %p183 = por %p181, %p182
    %p184 = scmp.ne.s32.totalorder %s176, %s178
    %p185 = scmp.eq.s32.totalorder %s21, 1
    %p186 = por %p184, %p185
    %p187 = scmp.ne.s32.totalorder %s178, %s179
    %p188 = scmp.eq.s32.totalorder %s21, 0
    %p189 = por %p187, %p188
    %p190 = scmp.ne.s32.totalorder %s178, %s179
    %p191 = scmp.eq.s32.totalorder %s22, 1
    %p192 = por %p190, %p191
    %p194 = scmp.ne.s32.totalorder %s179, %s193
    %p195 = scmp.eq.s32.totalorder %s22, 0
    %p196 = por %p194, %p195
    %s198 = sadd.s32 %s197, 1
    %p201 = scmp.eq.s32.totalorder %s16, 1
    %p202 = scmp.ne.s32.totalorder %s197, %s199
    %p203 = scmp.eq.s32.totalorder %s16, 0
    %p204 = por %p202, %p203
    %p205 = scmp.ne.s32.totalorder %s197, %s199
    %p206 = scmp.eq.s32.totalorder %s21, 1
    %p207 = por %p205, %p206
    %p208 = scmp.ne.s32.totalorder %s199, %s200
    %p209 = scmp.eq.s32.totalorder %s21, 0
    %p210 = por %p208, %p209
    %p211 = scmp.ne.s32.totalorder %s199, %s200
    %p212 = scmp.eq.s32.totalorder %s22, 1
    %p213 = por %p211, %p212
    %p215 = scmp.ne.s32.totalorder %s200, %s214
    %p216 = scmp.eq.s32.totalorder %s22, 0
    %p217 = por %p215, %p216
    %s219 = sadd.s32 %s218, 1
    %p222 = scmp.eq.s32.totalorder %s16, 1
    %p223 = scmp.ne.s32.totalorder %s218, %s220
    %p224 = scmp.eq.s32.totalorder %s16, 0
    %p225 = por %p223, %p224
    %p226 = scmp.ne.s32.totalorder %s218, %s220
    %p227 = scmp.eq.s32.totalorder %s21, 1
    %p228 = por %p226, %p227
    %p229 = scmp.ne.s32.totalorder %s220, %s221
    %p230 = scmp.eq.s32.totalorder %s21, 0
    %p231 = por %p229, %p230
    %p232 = scmp.ne.s32.totalorder %s220, %s221
    %p233 = scmp.eq.s32.totalorder %s22, 1
    %p234 = por %p232, %p233
    %p236 = scmp.ne.s32.totalorder %s221, %s235
    %p237 = scmp.eq.s32.totalorder %s22, 0
    %p238 = por %p236, %p237
    %s239 = ssub.s32 %s16, %s23
    %p240 = scmp.eq.s32.totalorder %s239, 0
    %s242 = sadd.s32 %s241, 1
    %s243 = scalar_select %p240, %s241, %s242
    %p246 = pneg %p240
    %p247 = scmp.eq.s32.totalorder %s16, 1
    %p248 = por %p246, %p247
    %p249 = scmp.ne.s32.totalorder %s241, %s244
    %p250 = scmp.eq.s32.totalorder %s16, 0
    %p251 = por %p249, %p250
    %p252 = scmp.ne.s32.totalorder %s241, %s244
    %p253 = scmp.eq.s32.totalorder %s21, 1
    %p254 = por %p252, %p253
    %p255 = scmp.ne.s32.totalorder %s244, %s245
    %p256 = scmp.eq.s32.totalorder %s21, 0
    %p257 = por %p255, %p256
    %p258 = scmp.ne.s32.totalorder %s244, %s245
    %p259 = scmp.eq.s32.totalorder %s22, 1
    %p260 = por %p258, %p259
    %p262 = scmp.ne.s32.totalorder %s245, %s261
    %p263 = scmp.eq.s32.totalorder %s22, 0
    %p264 = por %p262, %p263
    %p265 = scmp.le.s32.totalorder 1, %s16
    %p266 = scmp.lt.s32.totalorder %s16, 3
    %p267 = pnand %p265, %p266
    %p268 = pneg %p267
    // Predicated region
    $region9: #{inverted_residual_forward.1} parent=5 // pred_check
      _
    $region10: #{inverted_residual_forward.1} parent=5 // pred_check_branch
      %270 = sbr.rel (%p267) target = $region12
    $region11: #{inverted_residual_forward.1} parent=5 // pred_region
      %s271 = ssub.s32 %s16, 1
      // Predicated region
      $region13: #{inverted_residual_forward.1} parent=11 // pred_check
        %p272 = pneg %p63
      $region14: #{inverted_residual_forward.1} parent=11 // pred_check_branch
        %274 = sbr.rel (%p272) target = $region16
      $region15: #{inverted_residual_forward.1} parent=11 // pred_region
        _
      $region16: #{inverted_residual_forward.1} parent=11 // pred_fallthru
        _
      // Predicated region
      $region17: #{inverted_residual_forward.1} parent=11 // pred_check
        %p275 = pneg %p84
      $region18: #{inverted_residual_forward.1} parent=11 // pred_check_branch
        %277 = sbr.rel (%p275) target = $region20
      $region19: #{inverted_residual_forward.1} parent=11 // pred_region
        _
      $region20: #{inverted_residual_forward.1} parent=11 // pred_fallthru
        _
      // Predicated region
      $region21: #{inverted_residual_forward.1} parent=11 // pred_check
        %p278 = pneg %p105
      $region22: #{inverted_residual_forward.1} parent=11 // pred_check_branch
        %280 = sbr.rel (%p278) target = $region24
      $region23: #{inverted_residual_forward.1} parent=11 // pred_region
        _
      $region24: #{inverted_residual_forward.1} parent=11 // pred_fallthru
        _
      // Predicated region
      $region25: #{inverted_residual_forward.1} parent=11 // pred_check
        %p281 = pneg %p126
      $region26: #{inverted_residual_forward.1} parent=11 // pred_check_branch
        %283 = sbr.rel (%p281) target = $region28
      $region27: #{inverted_residual_forward.1} parent=11 // pred_region
        _
      $region28: #{inverted_residual_forward.1} parent=11 // pred_fallthru
        _
      // Predicated region
      $region29: #{inverted_residual_forward.1} parent=11 // pred_check
        %p284 = pneg %p147
      $region30: #{inverted_residual_forward.1} parent=11 // pred_check_branch
        %286 = sbr.rel (%p284) target = $region32
      $region31: #{inverted_residual_forward.1} parent=11 // pred_region
        _
      $region32: #{inverted_residual_forward.1} parent=11 // pred_fallthru
        _
      // Predicated region
      $region33: #{inverted_residual_forward.1} parent=11 // pred_check
        %p287 = pneg %p168
      $region34: #{inverted_residual_forward.1} parent=11 // pred_check_branch
        %289 = sbr.rel (%p287) target = $region36
      $region35: #{inverted_residual_forward.1} parent=11 // pred_region
        _
      $region36: #{inverted_residual_forward.1} parent=11 // pred_fallthru
        _
      // Predicated region
      $region37: #{inverted_residual_forward.1} parent=11 // pred_check
        %p290 = pneg %p189
      $region38: #{inverted_residual_forward.1} parent=11 // pred_check_branch
        %292 = sbr.rel (%p290) target = $region40
      $region39: #{inverted_residual_forward.1} parent=11 // pred_region
        _
      $region40: #{inverted_residual_forward.1} parent=11 // pred_fallthru
        _
      // Predicated region
      $region41: #{inverted_residual_forward.1} parent=11 // pred_check
        %p293 = pneg %p210
      $region42: #{inverted_residual_forward.1} parent=11 // pred_check_branch
        %295 = sbr.rel (%p293) target = $region44
      $region43: #{inverted_residual_forward.1} parent=11 // pred_region
        _
      $region44: #{inverted_residual_forward.1} parent=11 // pred_fallthru
        _
      // Predicated region
      $region45: #{inverted_residual_forward.1} parent=11 // pred_check
        %p296 = pneg %p231
      $region46: #{inverted_residual_forward.1} parent=11 // pred_check_branch
        %298 = sbr.rel (%p296) target = $region48
      $region47: #{inverted_residual_forward.1} parent=11 // pred_region
        _
      $region48: #{inverted_residual_forward.1} parent=11 // pred_fallthru
        _
    $region12: #{inverted_residual_forward.1} parent=5 // pred_fallthru
      _
    %p299 = scmp.lt.s32.totalorder %s16, 2
    // Predicated region
    $region49: #{inverted_residual_forward.1} parent=5 // pred_check
      %p300 = pneg %p299
    $region50: #{inverted_residual_forward.1} parent=5 // pred_check_branch
      %302 = sbr.rel (%p300) target = $region52
    $region51: #{inverted_residual_forward.1} parent=5 // pred_region
      // Predicated region
      $region53: #{inverted_residual_forward.1} parent=51 // pred_check
        %p303 = pneg %p36
      $region54: #{inverted_residual_forward.1} parent=51 // pred_check_branch
        %305 = sbr.rel (%p303) target = $region56
      $region55: #{inverted_residual_forward.1} parent=51 // pred_region
        %p306 = scmp.lt.s32.totalorder %s16, 1
        %s307 = scalar_select %p306, %s16, 1
        %s308 = smul.addr %s307, 32
        %s309 = smul.addr %s308, 8
        %s310 = scalar_lea.vmem %s0, %s309
      $region56: #{inverted_residual_forward.1} parent=51 // pred_fallthru
        _
    $region52: #{inverted_residual_forward.1} parent=5 // pred_fallthru
      _
    %p311 = scmp.le.s32.totalorder 1, %s16
    %p312 = scmp.lt.s32.totalorder %s16, 3
    %p313 = pnand %p311, %p312
    %p314 = pneg %p313
    // Predicated region
    $region57: #{inverted_residual_forward.1} parent=5 // pred_check
      _
    $region58: #{inverted_residual_forward.1} parent=5 // pred_check_branch
      %316 = sbr.rel (%p313) target = $region60
    $region59: #{inverted_residual_forward.1} parent=5 // pred_region
      %s317 = ssub.s32 %s16, 1
      %p318 = scmp.lt.s32.totalorder %s21, 1
      %s319 = scalar_select %p318, %s21, 1
      %s320 = smul.addr %s319, 32
      %s321 = smul.addr %s320, 8
      %s322 = scalar_lea.vmem %s0, %s321
      %p323 = pneg %p42
      %p324 = pneg %p39
      %p325 = pneg %p63
      %p326 = pneg %p60
      %p327 = pneg %p84
      %p328 = pneg %p81
      %p329 = pneg %p105
      %p330 = pneg %p102
      %p331 = pneg %p126
      %p332 = pneg %p123
      %p333 = pneg %p147
      %p334 = pneg %p144
      %p335 = pneg %p168
      %p336 = pneg %p165
      %p337 = pneg %p189
      %p338 = pneg %p186
      %p339 = pneg %p210
      %p340 = pneg %p207
      %p341 = pneg %p231
      %p342 = pneg %p228
      %p343 = pneg %p257
      %p344 = pneg %p254
      %p345 = scmp.lt.s32.totalorder %s21, 1
      %s346 = scalar_select %p345, %s21, 1
      %s347 = smul.addr %s346, 32
      %s348 = smul.addr %s347, 8
      %s349 = scalar_lea.vmem %s10, %s348
      %p350 = scmp.lt.s32.totalorder %s21, 1
      %s351 = scalar_select %p350, %s21, 1
      %s352 = smul.addr %s351, 32
      %s353 = smul.addr %s352, 8
      %s354 = scalar_lea.vmem %s0, %s353
      %p355 = scmp.lt.s32.totalorder %s21, 1
      %s356 = scalar_select %p355, %s21, 1
      %s357 = smul.addr %s356, 32
      %s358 = smul.addr %s357, 8
      %s359 = scalar_lea.vmem %s10, %s358
      %v360 = vld [vmem:[%s354] sm:$0xff]
      %v361 = vld [vmem:[%s354 + $0x8] sm:$0xff]
      %v362 = vld [vmem:[%s354 + $0x10] sm:$0xff]
      %v363 = vld [vmem:[%s354 + $0x18] sm:$0xff]
      %v364 = vld [vmem:[%s354 + $0x20] sm:$0xff]
      %v365 = vld [vmem:[%s354 + $0x28] sm:$0xff]
      %v366 = vld [vmem:[%s354 + $0x30] sm:$0xff]
      %v367 = vld [vmem:[%s354 + $0x38] sm:$0xff]
      %v368 = vld [vmem:[%s354 + $0x40] sm:$0xff]
      %v369 = vld [vmem:[%s354 + $0x48] sm:$0xff]
      %v370 = vld [vmem:[%s354 + $0x50] sm:$0xff]
      %v371 = vld [vmem:[%s354 + $0x58] sm:$0xff]
      %v372 = vld [vmem:[%s354 + $0x60] sm:$0xff]
      %v373 = vld [vmem:[%s354 + $0x68] sm:$0xff]
      %v374 = vld [vmem:[%s354 + $0x70] sm:$0xff]
      %v375 = vld [vmem:[%s354 + $0x78] sm:$0xff]
      %v376 = vld [vmem:[%s354 + $0x80] sm:$0xff]
      %v377 = vld [vmem:[%s354 + $0x88] sm:$0xff]
      %v378 = vld [vmem:[%s354 + $0x90] sm:$0xff]
      %v379 = vld [vmem:[%s354 + $0x98] sm:$0xff]
      %v380 = vld [vmem:[%s354 + $0xa0] sm:$0xff]
      %v381 = vld [vmem:[%s354 + $0xa8] sm:$0xff]
      %v382 = vld [vmem:[%s354 + $0xb0] sm:$0xff]
      %v383 = vld [vmem:[%s354 + $0xb8] sm:$0xff]
      %v384 = vld [vmem:[%s354 + $0xc0] sm:$0xff]
      %v385 = vld [vmem:[%s354 + $0xc8] sm:$0xff]
      %v386 = vld [vmem:[%s354 + $0xd0] sm:$0xff]
      %v387 = vld [vmem:[%s354 + $0xd8] sm:$0xff]
      %v388 = vld [vmem:[%s354 + $0xe0] sm:$0xff]
      %v389 = vld [vmem:[%s354 + $0xe8] sm:$0xff]
      %v390 = vld [vmem:[%s354 + $0xf0] sm:$0xff]
      %v391 = vld [vmem:[%s354 + $0xf8] sm:$0xff]
      %v392 = vld [vmem:[%s1] sm:$0xff]
      %v393 = vld [vmem:[%s1 + $0x8] sm:$0xff]
      %v394 = vld [vmem:[%s1 + $0x10] sm:$0xff]
      %v395 = vld [vmem:[%s1 + $0x18] sm:$0xff]
      %v396 = vld [vmem:[%s1 + $0x20] sm:$0xff]
      %v397 = vld [vmem:[%s1 + $0x28] sm:$0xff]
      %v398 = vld [vmem:[%s1 + $0x30] sm:$0xff]
      %v399 = vld [vmem:[%s1 + $0x38] sm:$0xff]
      %v400 = vld [vmem:[%s1 + $0x40] sm:$0xff]
      %v401 = vld [vmem:[%s1 + $0x48] sm:$0xff]
      %v402 = vld [vmem:[%s1 + $0x50] sm:$0xff]
      %v403 = vld [vmem:[%s1 + $0x58] sm:$0xff]
      %v404 = vld [vmem:[%s1 + $0x60] sm:$0xff]
      %v405 = vld [vmem:[%s1 + $0x68] sm:$0xff]
      %v406 = vld [vmem:[%s1 + $0x70] sm:$0xff]
      %v407 = vld [vmem:[%s1 + $0x78] sm:$0xff]
      %408 = vmatprep.subr.mxu0 0.0
      %409 = vmatpush1.msra.mxu0 %v392
      %410 = vmatprep.subr.mxu0 0.0
      %411 = vmatpush1.msra.mxu0 %v393
      %412 = vmatprep.subr.mxu0 0.0
      %413 = vmatpush1.msra.mxu0 %v394
      %414 = vmatprep.subr.mxu0 0.0
      %415 = vmatpush1.msra.mxu0 %v395
      %416 = vmatprep.subr.mxu0 0.0
      %417 = vmatpush1.msra.mxu0 %v396
      %418 = vmatprep.subr.mxu0 0.0
      %419 = vmatpush1.msra.mxu0 %v397
      %420 = vmatprep.subr.mxu0 0.0
      %421 = vmatpush1.msra.mxu0 %v398
      %422 = vmatprep.subr.mxu0 0.0
      %423 = vmatpush1.msra.mxu0 %v399
      %424 = vmatprep.subr.mxu0 0.0
      %425 = vmatpush1.msra.mxu0 %v400
      %426 = vmatprep.subr.mxu0 0.0
      %427 = vmatpush1.msra.mxu0 %v401
      %428 = vmatprep.subr.mxu0 0.0
      %429 = vmatpush1.msra.mxu0 %v402
      %430 = vmatprep.subr.mxu0 0.0
      %431 = vmatpush1.msra.mxu0 %v403
      %432 = vmatprep.subr.mxu0 0.0
      %433 = vmatpush1.msra.mxu0 %v404
      %434 = vmatprep.subr.mxu0 0.0
      %435 = vmatpush1.msra.mxu0 %v405
      %436 = vmatprep.subr.mxu0 0.0
      %437 = vmatpush1.msra.mxu0 %v406
      %438 = vmatprep.subr.mxu0 0.0
      %439 = vmatpush1.msra.mxu0 %v407
      %440 = vmatprep.subr.mxu0 0.0
      %441 = vmatpush1.msra.mxu0 0.0
      %442 = vmatprep.subr.mxu0 0.0
      %443 = vmatpush1.msra.mxu0 0.0
      %444 = vmatprep.subr.mxu0 0.0
      %445 = vmatpush1.msra.mxu0 0.0
      %446 = vmatprep.subr.mxu0 0.0
      %447 = vmatpush1.msra.mxu0 0.0
      %448 = vmatprep.subr.mxu0 0.0
      %449 = vmatpush1.msra.mxu0 0.0
      %450 = vmatprep.subr.mxu0 0.0
      %451 = vmatpush1.msra.mxu0 0.0
      %452 = vmatprep.subr.mxu0 0.0
      %453 = vmatpush1.msra.mxu0 0.0
      %454 = vmatprep.subr.mxu0 0.0
      %455 = vmatpush1.msra.mxu0 0.0
      %456 = vmatprep.subr.mxu0 0.0
      %457 = vmatpush1.msra.mxu0 0.0
      %458 = vmatprep.subr.mxu0 0.0
      %459 = vmatpush1.msra.mxu0 0.0
      %460 = vmatprep.subr.mxu0 0.0
      %461 = vmatpush1.msra.mxu0 0.0
      %462 = vmatprep.subr.mxu0 0.0
      %463 = vmatpush1.msra.mxu0 0.0
      %464 = vmatprep.subr.mxu0 0.0
      %465 = vmatpush1.msra.mxu0 0.0
      %466 = vmatprep.subr.mxu0 0.0
      %467 = vmatpush1.msra.mxu0 0.0
      %468 = vmatprep.subr.mxu0 0.0
      %469 = vmatpush1.msra.mxu0 0.0
      %470 = vmatprep.subr.mxu0 0.0
      %471 = vmatpush1.msra.mxu0 0.0
      %472 = vmatprep.mubr.f32.mxu0 0.0
      %473 = vmatmul.mubr.f32.gmra.mrb[0].mxu0 %v360
      %v474 = vpop.f32.mrb[0].mxu0
      %v475 = vadd.f32 0.0, %v474
      %v476 = vpop.f32.mrb[0].mxu0
      %477 = vmatprep.mubr.f32.mxu0 0.0
      %478 = vmatmul.mubr.f32.gmra.mrb[0].mxu0 %v361
      %v479 = vpop.f32.mrb[0].mxu0
      %v480 = vadd.f32 0.0, %v479
      %v481 = vpop.f32.mrb[0].mxu0
      %482 = vmatprep.mubr.f32.mxu0 0.0
      %483 = vmatmul.mubr.f32.gmra.mrb[0].mxu0 %v362
      %v484 = vpop.f32.mrb[0].mxu0
      %v485 = vadd.f32 0.0, %v484
      %v486 = vpop.f32.mrb[0].mxu0
      %487 = vmatprep.mubr.f32.mxu0 0.0
      %488 = vmatmul.mubr.f32.gmra.mrb[0].mxu0 %v363
      %v489 = vpop.f32.mrb[0].mxu0
      %v490 = vadd.f32 0.0, %v489
      %v491 = vpop.f32.mrb[0].mxu0
      %492 = vmatprep.mubr.f32.mxu0 0.0
      %493 = vmatmul.mubr.f32.gmra.mrb[0].mxu0 %v364
      %v494 = vpop.f32.mrb[0].mxu0
      %v495 = vadd.f32 0.0, %v494
      %v496 = vpop.f32.mrb[0].mxu0
      %497 = vmatprep.mubr.f32.mxu0 0.0
      %498 = vmatmul.mubr.f32.gmra.mrb[0].mxu0 %v365
      %v499 = vpop.f32.mrb[0].mxu0
      %v500 = vadd.f32 0.0, %v499
      %v501 = vpop.f32.mrb[0].mxu0
      %502 = vmatprep.mubr.f32.mxu0 0.0
      %503 = vmatmul.mubr.f32.gmra.mrb[0].mxu0 %v366
      %v504 = vpop.f32.mrb[0].mxu0
      %v505 = vadd.f32 0.0, %v504
      %v506 = vpop.f32.mrb[0].mxu0
      %507 = vmatprep.mubr.f32.mxu0 0.0
      %508 = vmatmul.mubr.f32.gmra.mrb[0].mxu0 %v367
      %v509 = vpop.f32.mrb[0].mxu0
      %v510 = vadd.f32 0.0, %v509
      %v511 = vpop.f32.mrb[0].mxu0
      %512 = vmatprep.mubr.f32.mxu0 0.0
      %513 = vmatmul.mubr.f32.gmra.mrb[0].mxu0 %v368
      %v514 = vpop.f32.mrb[0].mxu0
      %v515 = vadd.f32 0.0, %v514
      %v516 = vpop.f32.mrb[0].mxu0
      %517 = vmatprep.mubr.f32.mxu0 0.0
      %518 = vmatmul.mubr.f32.gmra.mrb[0].mxu0 %v369
      %v519 = vpop.f32.mrb[0].mxu0
      %v520 = vadd.f32 0.0, %v519
      %v521 = vpop.f32.mrb[0].mxu0
      %522 = vmatprep.mubr.f32.mxu0 0.0
      %523 = vmatmul.mubr.f32.gmra.mrb[0].mxu0 %v370
      %v524 = vpop.f32.mrb[0].mxu0
      %v525 = vadd.f32 0.0, %v524
      %v526 = vpop.f32.mrb[0].mxu0
      %527 = vmatprep.mubr.f32.mxu0 0.0
      %528 = vmatmul.mubr.f32.gmra.mrb[0].mxu0 %v371
      %v529 = vpop.f32.mrb[0].mxu0
      %v530 = vadd.f32 0.0, %v529
      %v531 = vpop.f32.mrb[0].mxu0
      %532 = vmatprep.mubr.f32.mxu0 0.0
      %533 = vmatmul.mubr.f32.gmra.mrb[0].mxu0 %v372
      %v534 = vpop.f32.mrb[0].mxu0
      %v535 = vadd.f32 0.0, %v534
      %v536 = vpop.f32.mrb[0].mxu0
      %537 = vmatprep.mubr.f32.mxu0 0.0
      %538 = vmatmul.mubr.f32.gmra.mrb[0].mxu0 %v373
      %v539 = vpop.f32.mrb[0].mxu0
      %v540 = vadd.f32 0.0, %v539
      %v541 = vpop.f32.mrb[0].mxu0
      %542 = vmatprep.mubr.f32.mxu0 0.0
      %543 = vmatmul.mubr.f32.gmra.mrb[0].mxu0 %v374
      %v544 = vpop.f32.mrb[0].mxu0
      %v545 = vadd.f32 0.0, %v544
      %v546 = vpop.f32.mrb[0].mxu0
      %547 = vmatprep.mubr.f32.mxu0 0.0
      %548 = vmatmul.mubr.f32.gmra.mrb[0].mxu0 %v375
      %v549 = vpop.f32.mrb[0].mxu0
      %v550 = vadd.f32 0.0, %v549
      %v551 = vpop.f32.mrb[0].mxu0
      %552 = vmatprep.mubr.f32.mxu0 0.0
      %553 = vmatmul.mubr.f32.gmra.mrb[0].mxu0 %v376
      %v554 = vpop.f32.mrb[0].mxu0
      %v555 = vadd.f32 0.0, %v554
      %v556 = vpop.f32.mrb[0].mxu0
      %557 = vmatprep.mubr.f32.mxu0 0.0
      %558 = vmatmul.mubr.f32.gmra.mrb[0].mxu0 %v377
      %v559 = vpop.f32.mrb[0].mxu0
      %v560 = vadd.f32 0.0, %v559
      %v561 = vpop.f32.mrb[0].mxu0
      %562 = vmatprep.mubr.f32.mxu0 0.0
      %563 = vmatmul.mubr.f32.gmra.mrb[0].mxu0 %v378
      %v564 = vpop.f32.mrb[0].mxu0
      %v565 = vadd.f32 0.0, %v564
      %v566 = vpop.f32.mrb[0].mxu0
      %567 = vmatprep.mubr.f32.mxu0 0.0
      %568 = vmatmul.mubr.f32.gmra.mrb[0].mxu0 %v379
      %v569 = vpop.f32.mrb[0].mxu0
      %v570 = vadd.f32 0.0, %v569
      %v571 = vpop.f32.mrb[0].mxu0
      %572 = vmatprep.mubr.f32.mxu0 0.0
      %573 = vmatmul.mubr.f32.gmra.mrb[0].mxu0 %v380
      %v574 = vpop.f32.mrb[0].mxu0
      %v575 = vadd.f32 0.0, %v574
      %v576 = vpop.f32.mrb[0].mxu0
      %577 = vmatprep.mubr.f32.mxu0 0.0
      %578 = vmatmul.mubr.f32.gmra.mrb[0].mxu0 %v381
      %v579 = vpop.f32.mrb[0].mxu0
      %v580 = vadd.f32 0.0, %v579
      %v581 = vpop.f32.mrb[0].mxu0
      %582 = vmatprep.mubr.f32.mxu0 0.0
      %583 = vmatmul.mubr.f32.gmra.mrb[0].mxu0 %v382
      %v584 = vpop.f32.mrb[0].mxu0
      %v585 = vadd.f32 0.0, %v584
      %v586 = vpop.f32.mrb[0].mxu0
      %587 = vmatprep.mubr.f32.mxu0 0.0
      %588 = vmatmul.mubr.f32.gmra.mrb[0].mxu0 %v383
      %v589 = vpop.f32.mrb[0].mxu0
      %v590 = vadd.f32 0.0, %v589
      %v591 = vpop.f32.mrb[0].mxu0
      %592 = vmatprep.mubr.f32.mxu0 0.0
      %593 = vmatmul.mubr.f32.gmra.mrb[0].mxu0 %v384
      %v594 = vpop.f32.mrb[0].mxu0
      %v595 = vadd.f32 0.0, %v594
      %v596 = vpop.f32.mrb[0].mxu0
      %597 = vmatprep.mubr.f32.mxu0 0.0
      %598 = vmatmul.mubr.f32.gmra.mrb[0].mxu0 %v385
      %v599 = vpop.f32.mrb[0].mxu0
      %v600 = vadd.f32 0.0, %v599
      %v601 = vpop.f32.mrb[0].mxu0
      %602 = vmatprep.mubr.f32.mxu0 0.0
      %603 = vmatmul.mubr.f32.gmra.mrb[0].mxu0 %v386
      %v604 = vpop.f32.mrb[0].mxu0
      %v605 = vadd.f32 0.0, %v604
      %v606 = vpop.f32.mrb[0].mxu0
      %607 = vmatprep.mubr.f32.mxu0 0.0
      %608 = vmatmul.mubr.f32.gmra.mrb[0].mxu0 %v387
      %v609 = vpop.f32.mrb[0].mxu0
      %v610 = vadd.f32 0.0, %v609
      %v611 = vpop.f32.mrb[0].mxu0
      %612 = vmatprep.mubr.f32.mxu0 0.0
      %613 = vmatmul.mubr.f32.gmra.mrb[0].mxu0 %v388
      %v614 = vpop.f32.mrb[0].mxu0
      %v615 = vadd.f32 0.0, %v614
      %v616 = vpop.f32.mrb[0].mxu0
      %617 = vmatprep.mubr.f32.mxu0 0.0
      %618 = vmatmul.mubr.f32.gmra.mrb[0].mxu0 %v389
      %v619 = vpop.f32.mrb[0].mxu0
      %v620 = vadd.f32 0.0, %v619
      %v621 = vpop.f32.mrb[0].mxu0
      %622 = vmatprep.mubr.f32.mxu0 0.0
      %623 = vmatmul.mubr.f32.gmra.mrb[0].mxu0 %v390
      %v624 = vpop.f32.mrb[0].mxu0
      %v625 = vadd.f32 0.0, %v624
      %v626 = vpop.f32.mrb[0].mxu0
      %627 = vmatprep.mubr.f32.mxu0 0.0
      %628 = vmatmul.mubr.f32.gmra.mrb[0].mxu0 %v391
      %v629 = vpop.f32.mrb[0].mxu0
      %v630 = vadd.f32 0.0, %v629
      %v631 = vpop.f32.mrb[0].mxu0
      %632 = vdwg.mxu0
      %v633 = vld [vmem:[%s2] sm:$0x1]
      %v635 = vlaneseq
      %v636 = vshrl.u32 %v635, 7
      %v637 = vsub.s32 0, %v636
      %v638 = vrot.slane %v633, %v637
      %v640 = vmul.f32 %v475, %v638
      %v641 = vmul.f32 %v480, %v638
      %v642 = vmul.f32 %v485, %v638
      %v643 = vmul.f32 %v490, %v638
      %v644 = vmul.f32 %v495, %v638
      %v645 = vmul.f32 %v500, %v638
      %v646 = vmul.f32 %v505, %v638
      %v647 = vmul.f32 %v510, %v638
      %v648 = vmul.f32 %v515, %v638
      %v649 = vmul.f32 %v520, %v638
      %v650 = vmul.f32 %v525, %v638
      %v651 = vmul.f32 %v530, %v638
      %v652 = vmul.f32 %v535, %v638
      %v653 = vmul.f32 %v540, %v638
      %v654 = vmul.f32 %v545, %v638
      %v655 = vmul.f32 %v550, %v638
      %v656 = vmul.f32 %v555, %v638
      %v657 = vmul.f32 %v560, %v638
      %v658 = vmul.f32 %v565, %v638
      %v659 = vmul.f32 %v570, %v638
      %v660 = vmul.f32 %v575, %v638
      %v661 = vmul.f32 %v580, %v638
      %v662 = vmul.f32 %v585, %v638
      %v663 = vmul.f32 %v590, %v638
      %v664 = vmul.f32 %v595, %v638
      %v665 = vmul.f32 %v600, %v638
      %v666 = vmul.f32 %v605, %v638
      %v667 = vmul.f32 %v610, %v638
      %v668 = vmul.f32 %v615, %v638
      %v669 = vmul.f32 %v620, %v638
      %v670 = vmul.f32 %v625, %v638
      %v671 = vmul.f32 %v630, %v638
      %v672 = vld [vmem:[%s3] sm:$0x1]
      %v674 = vlaneseq
      %v675 = vshrl.u32 %v674, 7
      %v676 = vsub.s32 0, %v675
      %v677 = vrot.slane %v672, %v676
      %v679 = vadd.f32 %v640, %v677
      %v680 = vadd.f32 %v641, %v677
      %v681 = vadd.f32 %v642, %v677
      %v682 = vadd.f32 %v643, %v677
      %v683 = vadd.f32 %v644, %v677
      %v684 = vadd.f32 %v645, %v677
      %v685 = vadd.f32 %v646, %v677
      %v686 = vadd.f32 %v647, %v677
      %v687 = vadd.f32 %v648, %v677
      %v688 = vadd.f32 %v649, %v677
      %v689 = vadd.f32 %v650, %v677
      %v690 = vadd.f32 %v651, %v677
      %v691 = vadd.f32 %v652, %v677
      %v692 = vadd.f32 %v653, %v677
      %v693 = vadd.f32 %v654, %v677
      %v694 = vadd.f32 %v655, %v677
      %v695 = vadd.f32 %v656, %v677
      %v696 = vadd.f32 %v657, %v677
      %v697 = vadd.f32 %v658, %v677
      %v698 = vadd.f32 %v659, %v677
      %v699 = vadd.f32 %v660, %v677
      %v700 = vadd.f32 %v661, %v677
      %v701 = vadd.f32 %v662, %v677
      %v702 = vadd.f32 %v663, %v677
      %v703 = vadd.f32 %v664, %v677
      %v704 = vadd.f32 %v665, %v677
      %v705 = vadd.f32 %v666, %v677
      %v706 = vadd.f32 %v667, %v677
      %v707 = vadd.f32 %v668, %v677
      %v708 = vadd.f32 %v669, %v677
      %v709 = vadd.f32 %v670, %v677
      %v710 = vadd.f32 %v671, %v677
      %v711 = vmax.f32 %v679, 0.0
      %v712 = vmax.f32 %v680, 0.0
      %v713 = vmax.f32 %v681, 0.0
      %v714 = vmax.f32 %v682, 0.0
      %v715 = vmax.f32 %v683, 0.0
      %v716 = vmax.f32 %v684, 0.0
      %v717 = vmax.f32 %v685, 0.0
      %v718 = vmax.f32 %v686, 0.0
      %v719 = vmax.f32 %v687, 0.0
      %v720 = vmax.f32 %v688, 0.0
      %v721 = vmax.f32 %v689, 0.0
      %v722 = vmax.f32 %v690, 0.0
      %v723 = vmax.f32 %v691, 0.0
      %v724 = vmax.f32 %v692, 0.0
      %v725 = vmax.f32 %v693, 0.0
      %v726 = vmax.f32 %v694, 0.0
      %v727 = vmax.f32 %v695, 0.0
      %v728 = vmax.f32 %v696, 0.0
      %v729 = vmax.f32 %v697, 0.0
      %v730 = vmax.f32 %v698, 0.0
      %v731 = vmax.f32 %v699, 0.0
      %v732 = vmax.f32 %v700, 0.0
      %v733 = vmax.f32 %v701, 0.0
      %v734 = vmax.f32 %v702, 0.0
      %v735 = vmax.f32 %v703, 0.0
      %v736 = vmax.f32 %v704, 0.0
      %v737 = vmax.f32 %v705, 0.0
      %v738 = vmax.f32 %v706, 0.0
      %v739 = vmax.f32 %v707, 0.0
      %v740 = vmax.f32 %v708, 0.0
      %v741 = vmax.f32 %v709, 0.0
      %v742 = vmax.f32 %v710, 0.0
      %743 = vst [vmem:[#allocation2] sm:$0xff] 0.0
      %744 = vst [vmem:[#allocation2 + $0x8] sm:$0xff] 0.0
      %s745 = scalar_lea.vmem [#allocation2], 272
      %746 = vst [vmem:[%s745] sm:$0xff] 0.0
      %747 = vst [vmem:[%s745 + $0x8] sm:$0xff] 0.0
      %s748 = scalar_lea.vmem [#allocation2], 16
      %749 = vst [vmem:[%s748] sm:$0xff] %v711
      %750 = vst [vmem:[%s748 + $0x8] sm:$0xff] %v712
      %751 = vst [vmem:[%s748 + $0x10] sm:$0xff] %v713
      %752 = vst [vmem:[%s748 + $0x18] sm:$0xff] %v714
      %753 = vst [vmem:[%s748 + $0x20] sm:$0xff] %v715
      %754 = vst [vmem:[%s748 + $0x28] sm:$0xff] %v716
      %755 = vst [vmem:[%s748 + $0x30] sm:$0xff] %v717
      %756 = vst [vmem:[%s748 + $0x38] sm:$0xff] %v718
      %757 = vst [vmem:[%s748 + $0x40] sm:$0xff] %v719
      %758 = vst [vmem:[%s748 + $0x48] sm:$0xff] %v720
      %759 = vst [vmem:[%s748 + $0x50] sm:$0xff] %v721
      %760 = vst [vmem:[%s748 + $0x58] sm:$0xff] %v722
      %761 = vst [vmem:[%s748 + $0x60] sm:$0xff] %v723
      %762 = vst [vmem:[%s748 + $0x68] sm:$0xff] %v724
      %763 = vst [vmem:[%s748 + $0x70] sm:$0xff] %v725
      %764 = vst [vmem:[%s748 + $0x78] sm:$0xff] %v726
      %765 = vst [vmem:[%s748 + $0x80] sm:$0xff] %v727
      %766 = vst [vmem:[%s748 + $0x88] sm:$0xff] %v728
      %767 = vst [vmem:[%s748 + $0x90] sm:$0xff] %v729
      %768 = vst [vmem:[%s748 + $0x98] sm:$0xff] %v730
      %769 = vst [vmem:[%s748 + $0xa0] sm:$0xff] %v731
      %770 = vst [vmem:[%s748 + $0xa8] sm:$0xff] %v732
      %771 = vst [vmem:[%s748 + $0xb0] sm:$0xff] %v733
      %772 = vst [vmem:[%s748 + $0xb8] sm:$0xff] %v734
      %773 = vst [vmem:[%s748 + $0xc0] sm:$0xff] %v735
      %774 = vst [vmem:[%s748 + $0xc8] sm:$0xff] %v736
      %775 = vst [vmem:[%s748 + $0xd0] sm:$0xff] %v737
      %776 = vst [vmem:[%s748 + $0xd8] sm:$0xff] %v738
      %777 = vst [vmem:[%s748 + $0xe0] sm:$0xff] %v739
      %778 = vst [vmem:[%s748 + $0xe8] sm:$0xff] %v740
      %779 = vst [vmem:[%s748 + $0xf0] sm:$0xff] %v741
      %780 = vst [vmem:[%s748 + $0xf8] sm:$0xff] %v742
      %v781 = vld [vmem:[%s4] sm:$0x7]
      %v782 = vld [vmem:[%s4 + $0x4] sm:$0x7]
      %v783 = vld [vmem:[%s4 + $0x8] sm:$0x7]
      %v784 = vld [vmem:[#allocation2] sm:$0xff]
      %v785 = vld [vmem:[#allocation2 + $0x8] sm:$0xff]
      %v786 = vld [vmem:[#allocation2 + $0x10] sm:$0xff]
      %v787 = vld [vmem:[#allocation2 + $0x18] sm:$0xff]
      %v788 = vld [vmem:[#allocation2 + $0x20] sm:$0xff]
      %v789 = vld [vmem:[#allocation2 + $0x28] sm:$0xff]
      %v790 = vld [vmem:[#allocation2 + $0x30] sm:$0xff]
      %v791 = vld [vmem:[#allocation2 + $0x38] sm:$0xff]
      %v792 = vld [vmem:[#allocation2 + $0x40] sm:$0xff]
      %v793 = vld [vmem:[#allocation2 + $0x48] sm:$0xff]
      %v794 = vld [vmem:[#allocation2 + $0x50] sm:$0xff]
      %v795 = vld [vmem:[#allocation2 + $0x58] sm:$0xff]
      %v796 = vld [vmem:[#allocation2 + $0x60] sm:$0xff]
      %v797 = vld [vmem:[#allocation2 + $0x68] sm:$0xff]
      %v798 = vld [vmem:[#allocation2 + $0x70] sm:$0xff]
      %v799 = vld [vmem:[#allocation2 + $0x78] sm:$0xff]
      %v800 = vld [vmem:[#allocation2 + $0x80] sm:$0xff]
      %v801 = vld [vmem:[#allocation2 + $0x88] sm:$0xff]
      %v802 = vld [vmem:[#allocation2 + $0x90] sm:$0xff]
      %v803 = vld [vmem:[#allocation2 + $0x98] sm:$0xff]
      %v804 = vld [vmem:[#allocation2 + $0xa0] sm:$0xff]
      %v805 = vld [vmem:[#allocation2 + $0xa8] sm:$0xff]
      %v806 = vld [vmem:[#allocation2 + $0xb0] sm:$0xff]
      %v807 = vld [vmem:[#allocation2 + $0xb8] sm:$0xff]
      %v808 = vld [vmem:[#allocation2 + $0xc0] sm:$0xff]
      %v809 = vld [vmem:[#allocation2 + $0xc8] sm:$0xff]
      %v810 = vld [vmem:[#allocation2 + $0xd0] sm:$0xff]
      %v811 = vld [vmem:[#allocation2 + $0xd8] sm:$0xff]
      %v812 = vld [vmem:[#allocation2 + $0xe0] sm:$0xff]
      %v813 = vld [vmem:[#allocation2 + $0xe8] sm:$0xff]
      %v814 = vld [vmem:[#allocation2 + $0xf0] sm:$0xff]
      %v815 = vld [vmem:[#allocation2 + $0xf8] sm:$0xff]
      %v816 = vlaneseq
      %v817 = vshrl.u32 %v816, 7
      %v818 = vsub.s32 0, %v817
      %v819 = vrot.slane %v781, %v818
      %v820 = vmul.f32 %v784, %v819
      %v821 = vmul.f32 %v785, %v819
      %v822 = vmul.f32 %v786, %v819
      %v823 = vmul.f32 %v787, %v819
      %v824 = vmul.f32 %v788, %v819
      %v825 = vmul.f32 %v789, %v819
      %v826 = vmul.f32 %v790, %v819
      %v827 = vmul.f32 %v791, %v819
      %v828 = vmul.f32 %v792, %v819
      %v829 = vmul.f32 %v793, %v819
      %v830 = vmul.f32 %v794, %v819
      %v831 = vmul.f32 %v795, %v819
      %v832 = vmul.f32 %v796, %v819
      %v833 = vmul.f32 %v797, %v819
      %v834 = vmul.f32 %v798, %v819
      %v835 = vmul.f32 %v799, %v819
      %v836 = vmul.f32 %v800, %v819
      %v837 = vmul.f32 %v801, %v819
      %v838 = vmul.f32 %v802, %v819
      %v839 = vmul.f32 %v803, %v819
      %v840 = vmul.f32 %v804, %v819
      %v841 = vmul.f32 %v805, %v819
      %v842 = vmul.f32 %v806, %v819
      %v843 = vmul.f32 %v807, %v819
      %v844 = vmul.f32 %v808, %v819
      %v845 = vmul.f32 %v809, %v819
      %v846 = vmul.f32 %v810, %v819
      %v847 = vmul.f32 %v811, %v819
      %v848 = vmul.f32 %v812, %v819
      %v849 = vmul.f32 %v813, %v819
      %v850 = vmul.f32 %v814, %v819
      %v851 = vmul.f32 %v815, %v819
      %v852 = vld [vmem:[%s748] sm:$0xff]
      %v853 = vld [vmem:[%s748 + $0x8] sm:$0xff]
      %v854 = vld [vmem:[%s748 + $0x10] sm:$0xff]
      %v855 = vld [vmem:[%s748 + $0x18] sm:$0xff]
      %v856 = vld [vmem:[%s748 + $0x20] sm:$0xff]
      %v857 = vld [vmem:[%s748 + $0x28] sm:$0xff]
      %v858 = vld [vmem:[%s748 + $0x30] sm:$0xff]
      %v859 = vld [vmem:[%s748 + $0x38] sm:$0xff]
      %v860 = vld [vmem:[%s748 + $0x40] sm:$0xff]
      %v861 = vld [vmem:[%s748 + $0x48] sm:$0xff]
      %v862 = vld [vmem:[%s748 + $0x50] sm:$0xff]
      %v863 = vld [vmem:[%s748 + $0x58] sm:$0xff]
      %v864 = vld [vmem:[%s748 + $0x60] sm:$0xff]
      %v865 = vld [vmem:[%s748 + $0x68] sm:$0xff]
      %v866 = vld [vmem:[%s748 + $0x70] sm:$0xff]
      %v867 = vld [vmem:[%s748 + $0x78] sm:$0xff]
      %v868 = vld [vmem:[%s748 + $0x80] sm:$0xff]
      %v869 = vld [vmem:[%s748 + $0x88] sm:$0xff]
      %v870 = vld [vmem:[%s748 + $0x90] sm:$0xff]
      %v871 = vld [vmem:[%s748 + $0x98] sm:$0xff]
      %v872 = vld [vmem:[%s748 + $0xa0] sm:$0xff]
      %v873 = vld [vmem:[%s748 + $0xa8] sm:$0xff]
      %v874 = vld [vmem:[%s748 + $0xb0] sm:$0xff]
      %v875 = vld [vmem:[%s748 + $0xb8] sm:$0xff]
      %v876 = vld [vmem:[%s748 + $0xc0] sm:$0xff]
      %v877 = vld [vmem:[%s748 + $0xc8] sm:$0xff]
      %v878 = vld [vmem:[%s748 + $0xd0] sm:$0xff]
      %v879 = vld [vmem:[%s748 + $0xd8] sm:$0xff]
      %v880 = vld [vmem:[%s748 + $0xe0] sm:$0xff]
      %v881 = vld [vmem:[%s748 + $0xe8] sm:$0xff]
      %v882 = vld [vmem:[%s748 + $0xf0] sm:$0xff]
      %v883 = vld [vmem:[%s748 + $0xf8] sm:$0xff]
      %v884 = vlaneseq
      %v885 = vshrl.u32 %v884, 7
      %v886 = vsub.s32 0, %v885
      %v887 = vrot.slane %v782, %v886
      %v888 = vmul.f32 %v852, %v887
      %v889 = vmul.f32 %v853, %v887
      %v890 = vmul.f32 %v854, %v887
      %v891 = vmul.f32 %v855, %v887
      %v892 = vmul.f32 %v856, %v887
      %v893 = vmul.f32 %v857, %v887
      %v894 = vmul.f32 %v858, %v887
      %v895 = vmul.f32 %v859, %v887
      %v896 = vmul.f32 %v860, %v887
      %v897 = vmul.f32 %v861, %v887
      %v898 = vmul.f32 %v862, %v887
      %v899 = vmul.f32 %v863, %v887
      %v900 = vmul.f32 %v864, %v887
      %v901 = vmul.f32 %v865, %v887
      %v902 = vmul.f32 %v866, %v887
      %v903 = vmul.f32 %v867, %v887
      %v904 = vmul.f32 %v868, %v887
      %v905 = vmul.f32 %v869, %v887
      %v906 = vmul.f32 %v870, %v887
      %v907 = vmul.f32 %v871, %v887
      %v908 = vmul.f32 %v872, %v887
      %v909 = vmul.f32 %v873, %v887
      %v910 = vmul.f32 %v874, %v887
      %v911 = vmul.f32 %v875, %v887
      %v912 = vmul.f32 %v876, %v887
      %v913 = vmul.f32 %v877, %v887
      %v914 = vmul.f32 %v878, %v887
      %v915 = vmul.f32 %v879, %v887
      %v916 = vmul.f32 %v880, %v887
      %v917 = vmul.f32 %v881, %v887
      %v918 = vmul.f32 %v882, %v887
      %v919 = vmul.f32 %v883, %v887
      %v920 = vadd.f32 %v820, %v888
      %v921 = vadd.f32 %v821, %v889
      %v922 = vadd.f32 %v822, %v890
      %v923 = vadd.f32 %v823, %v891
      %v924 = vadd.f32 %v824, %v892
      %v925 = vadd.f32 %v825, %v893
      %v926 = vadd.f32 %v826, %v894
      %v927 = vadd.f32 %v827, %v895
      %v928 = vadd.f32 %v828, %v896
      %v929 = vadd.f32 %v829, %v897
      %v930 = vadd.f32 %v830, %v898
      %v931 = vadd.f32 %v831, %v899
      %v932 = vadd.f32 %v832, %v900
      %v933 = vadd.f32 %v833, %v901
      %v934 = vadd.f32 %v834, %v902
      %v935 = vadd.f32 %v835, %v903
      %v936 = vadd.f32 %v836, %v904
      %v937 = vadd.f32 %v837, %v905
      %v938 = vadd.f32 %v838, %v906
      %v939 = vadd.f32 %v839, %v907
      %v940 = vadd.f32 %v840, %v908
      %v941 = vadd.f32 %v841, %v909
      %v942 = vadd.f32 %v842, %v910
      %v943 = vadd.f32 %v843, %v911
      %v944 = vadd.f32 %v844, %v912
      %v945 = vadd.f32 %v845, %v913
      %v946 = vadd.f32 %v846, %v914
      %v947 = vadd.f32 %v847, %v915
      %v948 = vadd.f32 %v848, %v916
      %v949 = vadd.f32 %v849, %v917
      %v950 = vadd.f32 %v850, %v918
      %v951 = vadd.f32 %v851, %v919
      %s952 = scalar_lea.vmem [#allocation2], 32
      %v953 = vld [vmem:[%s952] sm:$0xff]
      %v954 = vld [vmem:[%s952 + $0x8] sm:$0xff]
      %v955 = vld [vmem:[%s952 + $0x10] sm:$0xff]
      %v956 = vld [vmem:[%s952 + $0x18] sm:$0xff]
      %v957 = vld [vmem:[%s952 + $0x20] sm:$0xff]
      %v958 = vld [vmem:[%s952 + $0x28] sm:$0xff]
      %v959 = vld [vmem:[%s952 + $0x30] sm:$0xff]
      %v960 = vld [vmem:[%s952 + $0x38] sm:$0xff]
      %v961 = vld [vmem:[%s952 + $0x40] sm:$0xff]
      %v962 = vld [vmem:[%s952 + $0x48] sm:$0xff]
      %v963 = vld [vmem:[%s952 + $0x50] sm:$0xff]
      %v964 = vld [vmem:[%s952 + $0x58] sm:$0xff]
      %v965 = vld [vmem:[%s952 + $0x60] sm:$0xff]
      %v966 = vld [vmem:[%s952 + $0x68] sm:$0xff]
      %v967 = vld [vmem:[%s952 + $0x70] sm:$0xff]
      %v968 = vld [vmem:[%s952 + $0x78] sm:$0xff]
      %v969 = vld [vmem:[%s952 + $0x80] sm:$0xff]
      %v970 = vld [vmem:[%s952 + $0x88] sm:$0xff]
      %v971 = vld [vmem:[%s952 + $0x90] sm:$0xff]
      %v972 = vld [vmem:[%s952 + $0x98] sm:$0xff]
      %v973 = vld [vmem:[%s952 + $0xa0] sm:$0xff]
      %v974 = vld [vmem:[%s952 + $0xa8] sm:$0xff]
      %v975 = vld [vmem:[%s952 + $0xb0] sm:$0xff]
      %v976 = vld [vmem:[%s952 + $0xb8] sm:$0xff]
      %v977 = vld [vmem:[%s952 + $0xc0] sm:$0xff]
      %v978 = vld [vmem:[%s952 + $0xc8] sm:$0xff]
      %v979 = vld [vmem:[%s952 + $0xd0] sm:$0xff]
      %v980 = vld [vmem:[%s952 + $0xd8] sm:$0xff]
      %v981 = vld [vmem:[%s952 + $0xe0] sm:$0xff]
      %v982 = vld [vmem:[%s952 + $0xe8] sm:$0xff]
      %v983 = vld [vmem:[%s952 + $0xf0] sm:$0xff]
      %v984 = vld [vmem:[%s952 + $0xf8] sm:$0xff]
      %v985 = vlaneseq
      %v986 = vshrl.u32 %v985, 7
      %v987 = vsub.s32 0, %v986
      %v988 = vrot.slane %v783, %v987
      %v989 = vmul.f32 %v953, %v988
      %v990 = vmul.f32 %v954, %v988
      %v991 = vmul.f32 %v955, %v988
      %v992 = vmul.f32 %v956, %v988
      %v993 = vmul.f32 %v957, %v988
      %v994 = vmul.f32 %v958, %v988
      %v995 = vmul.f32 %v959, %v988
      %v996 = vmul.f32 %v960, %v988
      %v997 = vmul.f32 %v961, %v988
      %v998 = vmul.f32 %v962, %v988
      %v999 = vmul.f32 %v963, %v988
      %v1000 = vmul.f32 %v964, %v988
      %v1001 = vmul.f32 %v965, %v988
      %v1002 = vmul.f32 %v966, %v988
      %v1003 = vmul.f32 %v967, %v988
      %v1004 = vmul.f32 %v968, %v988
      %v1005 = vmul.f32 %v969, %v988
      %v1006 = vmul.f32 %v970, %v988
      %v1007 = vmul.f32 %v971, %v988
      %v1008 = vmul.f32 %v972, %v988
      %v1009 = vmul.f32 %v973, %v988
      %v1010 = vmul.f32 %v974, %v988
      %v1011 = vmul.f32 %v975, %v988
      %v1012 = vmul.f32 %v976, %v988
      %v1013 = vmul.f32 %v977, %v988
      %v1014 = vmul.f32 %v978, %v988
      %v1015 = vmul.f32 %v979, %v988
      %v1016 = vmul.f32 %v980, %v988
      %v1017 = vmul.f32 %v981, %v988
      %v1018 = vmul.f32 %v982, %v988
      %v1019 = vmul.f32 %v983, %v988
      %v1020 = vmul.f32 %v984, %v988
      %v1021 = vadd.f32 %v920, %v989
      %v1022 = vadd.f32 %v921, %v990
      %v1023 = vadd.f32 %v922, %v991
      %v1024 = vadd.f32 %v923, %v992
      %v1025 = vadd.f32 %v924, %v993
      %v1026 = vadd.f32 %v925, %v994
      %v1027 = vadd.f32 %v926, %v995
      %v1028 = vadd.f32 %v927, %v996
      %v1029 = vadd.f32 %v928, %v997
      %v1030 = vadd.f32 %v929, %v998
      %v1031 = vadd.f32 %v930, %v999
      %v1032 = vadd.f32 %v931, %v1000
      %v1033 = vadd.f32 %v932, %v1001
      %v1034 = vadd.f32 %v933, %v1002
      %v1035 = vadd.f32 %v934, %v1003
      %v1036 = vadd.f32 %v935, %v1004
      %v1037 = vadd.f32 %v936, %v1005
      %v1038 = vadd.f32 %v937, %v1006
      %v1039 = vadd.f32 %v938, %v1007
      %v1040 = vadd.f32 %v939, %v1008
      %v1041 = vadd.f32 %v940, %v1009
      %v1042 = vadd.f32 %v941, %v1010
      %v1043 = vadd.f32 %v942, %v1011
      %v1044 = vadd.f32 %v943, %v1012
      %v1045 = vadd.f32 %v944, %v1013
      %v1046 = vadd.f32 %v945, %v1014
      %v1047 = vadd.f32 %v946, %v1015
      %v1048 = vadd.f32 %v947, %v1016
      %v1049 = vadd.f32 %v948, %v1017
      %v1050 = vadd.f32 %v949, %v1018
      %v1051 = vadd.f32 %v950, %v1019
      %v1052 = vadd.f32 %v951, %v1020
      %v1053 = vlaneseq
      %v1054 = vshrl.u32 %v1053, 7
      %v1055 = vsub.s32 1, %v1054
      %v1056 = vrot.slane %v781, %v1055
      %v1057 = vmul.f32 %v784, %v1056
      %v1058 = vmul.f32 %v785, %v1056
      %v1059 = vmul.f32 %v786, %v1056
      %v1060 = vmul.f32 %v787, %v1056
      %v1061 = vmul.f32 %v788, %v1056
      %v1062 = vmul.f32 %v789, %v1056
      %v1063 = vmul.f32 %v790, %v1056
      %v1064 = vmul.f32 %v791, %v1056
      %v1065 = vmul.f32 %v792, %v1056
      %v1066 = vmul.f32 %v793, %v1056
      %v1067 = vmul.f32 %v794, %v1056
      %v1068 = vmul.f32 %v795, %v1056
      %v1069 = vmul.f32 %v796, %v1056
      %v1070 = vmul.f32 %v797, %v1056
      %v1071 = vmul.f32 %v798, %v1056
      %v1072 = vmul.f32 %v799, %v1056
      %v1073 = vmul.f32 %v800, %v1056
      %v1074 = vmul.f32 %v801, %v1056
      %v1075 = vmul.f32 %v802, %v1056
      %v1076 = vmul.f32 %v803, %v1056
      %v1077 = vmul.f32 %v804, %v1056
      %v1078 = vmul.f32 %v805, %v1056
      %v1079 = vmul.f32 %v806, %v1056
      %v1080 = vmul.f32 %v807, %v1056
      %v1081 = vmul.f32 %v808, %v1056
      %v1082 = vmul.f32 %v809, %v1056
      %v1083 = vmul.f32 %v810, %v1056
      %v1084 = vmul.f32 %v811, %v1056
      %v1085 = vmul.f32 %v812, %v1056
      %v1086 = vmul.f32 %v813, %v1056
      %v1087 = vmul.f32 %v814, %v1056
      %v1088 = vmul.f32 %v815, %v1056
      %v1089 = vlaneseq
      %v1090 = vshrl.u32 %v1089, 7
      %v1091 = vsub.s32 1, %v1090
      %v1092 = vrot.slane %v782, %v1091
      %v1093 = vmul.f32 %v852, %v1092
      %v1094 = vmul.f32 %v853, %v1092
      %v1095 = vmul.f32 %v854, %v1092
      %v1096 = vmul.f32 %v855, %v1092
      %v1097 = vmul.f32 %v856, %v1092
      %v1098 = vmul.f32 %v857, %v1092
      %v1099 = vmul.f32 %v858, %v1092
      %v1100 = vmul.f32 %v859, %v1092
      %v1101 = vmul.f32 %v860, %v1092
      %v1102 = vmul.f32 %v861, %v1092
      %v1103 = vmul.f32 %v862, %v1092
      %v1104 = vmul.f32 %v863, %v1092
      %v1105 = vmul.f32 %v864, %v1092
      %v1106 = vmul.f32 %v865, %v1092
      %v1107 = vmul.f32 %v866, %v1092
      %v1108 = vmul.f32 %v867, %v1092
      %v1109 = vmul.f32 %v868, %v1092
      %v1110 = vmul.f32 %v869, %v1092
      %v1111 = vmul.f32 %v870, %v1092
      %v1112 = vmul.f32 %v871, %v1092
      %v1113 = vmul.f32 %v872, %v1092
      %v1114 = vmul.f32 %v873, %v1092
      %v1115 = vmul.f32 %v874, %v1092
      %v1116 = vmul.f32 %v875, %v1092
      %v1117 = vmul.f32 %v876, %v1092
      %v1118 = vmul.f32 %v877, %v1092
      %v1119 = vmul.f32 %v878, %v1092
      %v1120 = vmul.f32 %v879, %v1092
      %v1121 = vmul.f32 %v880, %v1092
      %v1122 = vmul.f32 %v881, %v1092
      %v1123 = vmul.f32 %v882, %v1092
      %v1124 = vmul.f32 %v883, %v1092
      %v1125 = vadd.f32 %v1057, %v1093
      %v1126 = vadd.f32 %v1058, %v1094
      %v1127 = vadd.f32 %v1059, %v1095
      %v1128 = vadd.f32 %v1060, %v1096
      %v1129 = vadd.f32 %v1061, %v1097
      %v1130 = vadd.f32 %v1062, %v1098
      %v1131 = vadd.f32 %v1063, %v1099
      %v1132 = vadd.f32 %v1064, %v1100
      %v1133 = vadd.f32 %v1065, %v1101
      %v1134 = vadd.f32 %v1066, %v1102
      %v1135 = vadd.f32 %v1067, %v1103
      %v1136 = vadd.f32 %v1068, %v1104
      %v1137 = vadd.f32 %v1069, %v1105
      %v1138 = vadd.f32 %v1070, %v1106
      %v1139 = vadd.f32 %v1071, %v1107
      %v1140 = vadd.f32 %v1072, %v1108
      %v1141 = vadd.f32 %v1073, %v1109
      %v1142 = vadd.f32 %v1074, %v1110
      %v1143 = vadd.f32 %v1075, %v1111
      %v1144 = vadd.f32 %v1076, %v1112
      %v1145 = vadd.f32 %v1077, %v1113
      %v1146 = vadd.f32 %v1078, %v1114
      %v1147 = vadd.f32 %v1079, %v1115
      %v1148 = vadd.f32 %v1080, %v1116
      %v1149 = vadd.f32 %v1081, %v1117
      %v1150 = vadd.f32 %v1082, %v1118
      %v1151 = vadd.f32 %v1083, %v1119
      %v1152 = vadd.f32 %v1084, %v1120
      %v1153 = vadd.f32 %v1085, %v1121
      %v1154 = vadd.f32 %v1086, %v1122
      %v1155 = vadd.f32 %v1087, %v1123
      %v1156 = vadd.f32 %v1088, %v1124
      %v1157 = vlaneseq
      %v1158 = vshrl.u32 %v1157, 7
      %v1159 = vsub.s32 1, %v1158
      %v1160 = vrot.slane %v783, %v1159
      %v1161 = vmul.f32 %v953, %v1160
      %v1162 = vmul.f32 %v954, %v1160
      %v1163 = vmul.f32 %v955, %v1160
      %v1164 = vmul.f32 %v956, %v1160
      %v1165 = vmul.f32 %v957, %v1160
      %v1166 = vmul.f32 %v958, %v1160
      %v1167 = vmul.f32 %v959, %v1160
      %v1168 = vmul.f32 %v960, %v1160
      %v1169 = vmul.f32 %v961, %v1160
      %v1170 = vmul.f32 %v962, %v1160
      %v1171 = vmul.f32 %v963, %v1160
      %v1172 = vmul.f32 %v964, %v1160
      %v1173 = vmul.f32 %v965, %v1160
      %v1174 = vmul.f32 %v966, %v1160
      %v1175 = vmul.f32 %v967, %v1160
      %v1176 = vmul.f32 %v968, %v1160
      %v1177 = vmul.f32 %v969, %v1160
      %v1178 = vmul.f32 %v970, %v1160
      %v1179 = vmul.f32 %v971, %v1160
      %v1180 = vmul.f32 %v972, %v1160
      %v1181 = vmul.f32 %v973, %v1160
      %v1182 = vmul.f32 %v974, %v1160
      %v1183 = vmul.f32 %v975, %v1160
      %v1184 = vmul.f32 %v976, %v1160
      %v1185 = vmul.f32 %v977, %v1160
      %v1186 = vmul.f32 %v978, %v1160
      %v1187 = vmul.f32 %v979, %v1160
      %v1188 = vmul.f32 %v980, %v1160
      %v1189 = vmul.f32 %v981, %v1160
      %v1190 = vmul.f32 %v982, %v1160
      %v1191 = vmul.f32 %v983, %v1160
      %v1192 = vmul.f32 %v984, %v1160
      %v1193 = vadd.f32 %v1125, %v1161
      %v1194 = vadd.f32 %v1126, %v1162
      %v1195 = vadd.f32 %v1127, %v1163
      %v1196 = vadd.f32 %v1128, %v1164
      %v1197 = vadd.f32 %v1129, %v1165
      %v1198 = vadd.f32 %v1130, %v1166
      %v1199 = vadd.f32 %v1131, %v1167
      %v1200 = vadd.f32 %v1132, %v1168
      %v1201 = vadd.f32 %v1133, %v1169
      %v1202 = vadd.f32 %v1134, %v1170
      %v1203 = vadd.f32 %v1135, %v1171
      %v1204 = vadd.f32 %v1136, %v1172
      %v1205 = vadd.f32 %v1137, %v1173
      %v1206 = vadd.f32 %v1138, %v1174
      %v1207 = vadd.f32 %v1139, %v1175
      %v1208 = vadd.f32 %v1140, %v1176
      %v1209 = vadd.f32 %v1141, %v1177
      %v1210 = vadd.f32 %v1142, %v1178
      %v1211 = vadd.f32 %v1143, %v1179
      %v1212 = vadd.f32 %v1144, %v1180
      %v1213 = vadd.f32 %v1145, %v1181
      %v1214 = vadd.f32 %v1146, %v1182
      %v1215 = vadd.f32 %v1147, %v1183
      %v1216 = vadd.f32 %v1148, %v1184
      %v1217 = vadd.f32 %v1149, %v1185
      %v1218 = vadd.f32 %v1150, %v1186
      %v1219 = vadd.f32 %v1151, %v1187
      %v1220 = vadd.f32 %v1152, %v1188
      %v1221 = vadd.f32 %v1153, %v1189
      %v1222 = vadd.f32 %v1154, %v1190
      %v1223 = vadd.f32 %v1155, %v1191
      %v1224 = vadd.f32 %v1156, %v1192
      %v1225 = vlaneseq
      %v1226 = vshrl.u32 %v1225, 7
      %v1227 = vsub.s32 2, %v1226
      %v1228 = vrot.slane %v781, %v1227
      %v1229 = vmul.f32 %v784, %v1228
      %v1230 = vmul.f32 %v785, %v1228
      %v1231 = vmul.f32 %v786, %v1228
      %v1232 = vmul.f32 %v787, %v1228
      %v1233 = vmul.f32 %v788, %v1228
      %v1234 = vmul.f32 %v789, %v1228
      %v1235 = vmul.f32 %v790, %v1228
      %v1236 = vmul.f32 %v791, %v1228
      %v1237 = vmul.f32 %v792, %v1228
      %v1238 = vmul.f32 %v793, %v1228
      %v1239 = vmul.f32 %v794, %v1228
      %v1240 = vmul.f32 %v795, %v1228
      %v1241 = vmul.f32 %v796, %v1228
      %v1242 = vmul.f32 %v797, %v1228
      %v1243 = vmul.f32 %v798, %v1228
      %v1244 = vmul.f32 %v799, %v1228
      %v1245 = vmul.f32 %v800, %v1228
      %v1246 = vmul.f32 %v801, %v1228
      %v1247 = vmul.f32 %v802, %v1228
      %v1248 = vmul.f32 %v803, %v1228
      %v1249 = vmul.f32 %v804, %v1228
      %v1250 = vmul.f32 %v805, %v1228
      %v1251 = vmul.f32 %v806, %v1228
      %v1252 = vmul.f32 %v807, %v1228
      %v1253 = vmul.f32 %v808, %v1228
      %v1254 = vmul.f32 %v809, %v1228
      %v1255 = vmul.f32 %v810, %v1228
      %v1256 = vmul.f32 %v811, %v1228
      %v1257 = vmul.f32 %v812, %v1228
      %v1258 = vmul.f32 %v813, %v1228
      %v1259 = vmul.f32 %v814, %v1228
      %v1260 = vmul.f32 %v815, %v1228
      %v1261 = vlaneseq
      %v1262 = vshrl.u32 %v1261, 7
      %v1263 = vsub.s32 2, %v1262
      %v1264 = vrot.slane %v782, %v1263
      %v1265 = vmul.f32 %v852, %v1264
      %v1266 = vmul.f32 %v853, %v1264
      %v1267 = vmul.f32 %v854, %v1264
      %v1268 = vmul.f32 %v855, %v1264
      %v1269 = vmul.f32 %v856, %v1264
      %v1270 = vmul.f32 %v857, %v1264
      %v1271 = vmul.f32 %v858, %v1264
      %v1272 = vmul.f32 %v859, %v1264
      %v1273 = vmul.f32 %v860, %v1264
      %v1274 = vmul.f32 %v861, %v1264
      %v1275 = vmul.f32 %v862, %v1264
      %v1276 = vmul.f32 %v863, %v1264
      %v1277 = vmul.f32 %v864, %v1264
      %v1278 = vmul.f32 %v865, %v1264
      %v1279 = vmul.f32 %v866, %v1264
      %v1280 = vmul.f32 %v867, %v1264
      %v1281 = vmul.f32 %v868, %v1264
      %v1282 = vmul.f32 %v869, %v1264
      %v1283 = vmul.f32 %v870, %v1264
      %v1284 = vmul.f32 %v871, %v1264
      %v1285 = vmul.f32 %v872, %v1264
      %v1286 = vmul.f32 %v873, %v1264
      %v1287 = vmul.f32 %v874, %v1264
      %v1288 = vmul.f32 %v875, %v1264
      %v1289 = vmul.f32 %v876, %v1264
      %v1290 = vmul.f32 %v877, %v1264
      %v1291 = vmul.f32 %v878, %v1264
      %v1292 = vmul.f32 %v879, %v1264
      %v1293 = vmul.f32 %v880, %v1264
      %v1294 = vmul.f32 %v881, %v1264
      %v1295 = vmul.f32 %v882, %v1264
      %v1296 = vmul.f32 %v883, %v1264
      %v1297 = vadd.f32 %v1229, %v1265
      %v1298 = vadd.f32 %v1230, %v1266
      %v1299 = vadd.f32 %v1231, %v1267
      %v1300 = vadd.f32 %v1232, %v1268
      %v1301 = vadd.f32 %v1233, %v1269
      %v1302 = vadd.f32 %v1234, %v1270
      %v1303 = vadd.f32 %v1235, %v1271
      %v1304 = vadd.f32 %v1236, %v1272
      %v1305 = vadd.f32 %v1237, %v1273
      %v1306 = vadd.f32 %v1238, %v1274
      %v1307 = vadd.f32 %v1239, %v1275
      %v1308 = vadd.f32 %v1240, %v1276
      %v1309 = vadd.f32 %v1241, %v1277
      %v1310 = vadd.f32 %v1242, %v1278
      %v1311 = vadd.f32 %v1243, %v1279
      %v1312 = vadd.f32 %v1244, %v1280
      %v1313 = vadd.f32 %v1245, %v1281
      %v1314 = vadd.f32 %v1246, %v1282
      %v1315 = vadd.f32 %v1247, %v1283
      %v1316 = vadd.f32 %v1248, %v1284
      %v1317 = vadd.f32 %v1249, %v1285
      %v1318 = vadd.f32 %v1250, %v1286
      %v1319 = vadd.f32 %v1251, %v1287
      %v1320 = vadd.f32 %v1252, %v1288
      %v1321 = vadd.f32 %v1253, %v1289
      %v1322 = vadd.f32 %v1254, %v1290
      %v1323 = vadd.f32 %v1255, %v1291
      %v1324 = vadd.f32 %v1256, %v1292
      %v1325 = vadd.f32 %v1257, %v1293
      %v1326 = vadd.f32 %v1258, %v1294
      %v1327 = vadd.f32 %v1259, %v1295
      %v1328 = vadd.f32 %v1260, %v1296
      %v1329 = vlaneseq
      %v1330 = vshrl.u32 %v1329, 7
      %v1331 = vsub.s32 2, %v1330
      %v1332 = vrot.slane %v783, %v1331
      %v1333 = vmul.f32 %v953, %v1332
      %v1334 = vmul.f32 %v954, %v1332
      %v1335 = vmul.f32 %v955, %v1332
      %v1336 = vmul.f32 %v956, %v1332
      %v1337 = vmul.f32 %v957, %v1332
      %v1338 = vmul.f32 %v958, %v1332
      %v1339 = vmul.f32 %v959, %v1332
      %v1340 = vmul.f32 %v960, %v1332
      %v1341 = vmul.f32 %v961, %v1332
      %v1342 = vmul.f32 %v962, %v1332
      %v1343 = vmul.f32 %v963, %v1332
      %v1344 = vmul.f32 %v964, %v1332
      %v1345 = vmul.f32 %v965, %v1332
      %v1346 = vmul.f32 %v966, %v1332
      %v1347 = vmul.f32 %v967, %v1332
      %v1348 = vmul.f32 %v968, %v1332
      %v1349 = vmul.f32 %v969, %v1332
      %v1350 = vmul.f32 %v970, %v1332
      %v1351 = vmul.f32 %v971, %v1332
      %v1352 = vmul.f32 %v972, %v1332
      %v1353 = vmul.f32 %v973, %v1332
      %v1354 = vmul.f32 %v974, %v1332
      %v1355 = vmul.f32 %v975, %v1332
      %v1356 = vmul.f32 %v976, %v1332
      %v1357 = vmul.f32 %v977, %v1332
      %v1358 = vmul.f32 %v978, %v1332
      %v1359 = vmul.f32 %v979, %v1332
      %v1360 = vmul.f32 %v980, %v1332
      %v1361 = vmul.f32 %v981, %v1332
      %v1362 = vmul.f32 %v982, %v1332
      %v1363 = vmul.f32 %v983, %v1332
      %v1364 = vmul.f32 %v984, %v1332
      %v1365 = vadd.f32 %v1297, %v1333
      %v1366 = vadd.f32 %v1298, %v1334
      %v1367 = vadd.f32 %v1299, %v1335
      %v1368 = vadd.f32 %v1300, %v1336
      %v1369 = vadd.f32 %v1301, %v1337
      %v1370 = vadd.f32 %v1302, %v1338
      %v1371 = vadd.f32 %v1303, %v1339
      %v1372 = vadd.f32 %v1304, %v1340
      %v1373 = vadd.f32 %v1305, %v1341
      %v1374 = vadd.f32 %v1306, %v1342
      %v1375 = vadd.f32 %v1307, %v1343
      %v1376 = vadd.f32 %v1308, %v1344
      %v1377 = vadd.f32 %v1309, %v1345
      %v1378 = vadd.f32 %v1310, %v1346
      %v1379 = vadd.f32 %v1311, %v1347
      %v1380 = vadd.f32 %v1312, %v1348
      %v1381 = vadd.f32 %v1313, %v1349
      %v1382 = vadd.f32 %v1314, %v1350
      %v1383 = vadd.f32 %v1315, %v1351
      %v1384 = vadd.f32 %v1316, %v1352
      %v1385 = vadd.f32 %v1317, %v1353
      %v1386 = vadd.f32 %v1318, %v1354
      %v1387 = vadd.f32 %v1319, %v1355
      %v1388 = vadd.f32 %v1320, %v1356
      %v1389 = vadd.f32 %v1321, %v1357
      %v1390 = vadd.f32 %v1322, %v1358
      %v1391 = vadd.f32 %v1323, %v1359
      %v1392 = vadd.f32 %v1324, %v1360
      %v1393 = vadd.f32 %v1325, %v1361
      %v1394 = vadd.f32 %v1326, %v1362
      %v1395 = vadd.f32 %v1327, %v1363
      %v1396 = vadd.f32 %v1328, %v1364
      %v1397 = vlaneseq
      %v1398 = vshrl.u32 %v1397, 7
      %v1399 = vadd.s32 %v1398, 8
      %vm1400 = vcmp.gt.s32.totalorder %v1398, 0
      %vm1401 = vcmp.gt.s32.totalorder %v1399, 0
      %v1402 = vrot.slane %v1021, 7
      %v1403 = vrot.slane %v1023, 7
      %v1404 = vrot.slane %v1025, 7
      %v1405 = vrot.slane %v1027, 7
      %v1406 = vrot.slane %v1029, 7
      %v1407 = vrot.slane %v1031, 7
      %v1408 = vrot.slane %v1033, 7
      %v1409 = vrot.slane %v1035, 7
      %v1410 = vrot.slane %v1037, 7
      %v1411 = vrot.slane %v1039, 7
      %v1412 = vrot.slane %v1041, 7
      %v1413 = vrot.slane %v1043, 7
      %v1414 = vrot.slane %v1045, 7
      %v1415 = vrot.slane %v1047, 7
      %v1416 = vrot.slane %v1049, 7
      %v1417 = vrot.slane %v1051, 7
      %v1418 = vrot.slane %v1022, 7
      %v1419 = vrot.slane %v1024, 7
      %v1420 = vrot.slane %v1026, 7
      %v1421 = vrot.slane %v1028, 7
      %v1422 = vrot.slane %v1030, 7
      %v1423 = vrot.slane %v1032, 7
      %v1424 = vrot.slane %v1034, 7
      %v1425 = vrot.slane %v1036, 7
      %v1426 = vrot.slane %v1038, 7
      %v1427 = vrot.slane %v1040, 7
      %v1428 = vrot.slane %v1042, 7
      %v1429 = vrot.slane %v1044, 7
      %v1430 = vrot.slane %v1046, 7
      %v1431 = vrot.slane %v1048, 7
      %v1432 = vrot.slane %v1050, 7
      %v1433 = vrot.slane %v1052, 7
      %vm1434 = vcmp.lt.s32.totalorder %v1398, 1
      %v1435 = vsel %vm1434, %v1402, %v1418
      %v1436 = vsel %vm1434, %v1403, %v1419
      %v1437 = vsel %vm1434, %v1404, %v1420
      %v1438 = vsel %vm1434, %v1405, %v1421
      %v1439 = vsel %vm1434, %v1406, %v1422
      %v1440 = vsel %vm1434, %v1407, %v1423
      %v1441 = vsel %vm1434, %v1408, %v1424
      %v1442 = vsel %vm1434, %v1409, %v1425
      %v1443 = vsel %vm1434, %v1410, %v1426
      %v1444 = vsel %vm1434, %v1411, %v1427
      %v1445 = vsel %vm1434, %v1412, %v1428
      %v1446 = vsel %vm1434, %v1413, %v1429
      %v1447 = vsel %vm1434, %v1414, %v1430
      %v1448 = vsel %vm1434, %v1415, %v1431
      %v1449 = vsel %vm1434, %v1416, %v1432
      %v1450 = vsel %vm1434, %v1417, %v1433
      %v1451 = vsel %vm1434, %v1418, %v1402
      %v1452 = vsel %vm1434, %v1419, %v1403
      %v1453 = vsel %vm1434, %v1420, %v1404
      %v1454 = vsel %vm1434, %v1421, %v1405
      %v1455 = vsel %vm1434, %v1422, %v1406
      %v1456 = vsel %vm1434, %v1423, %v1407
      %v1457 = vsel %vm1434, %v1424, %v1408
      %v1458 = vsel %vm1434, %v1425, %v1409
      %v1459 = vsel %vm1434, %v1426, %v1410
      %v1460 = vsel %vm1434, %v1427, %v1411
      %v1461 = vsel %vm1434, %v1428, %v1412
      %v1462 = vsel %vm1434, %v1429, %v1413
      %v1463 = vsel %vm1434, %v1430, %v1414
      %v1464 = vsel %vm1434, %v1431, %v1415
      %v1465 = vsel %vm1434, %v1432, %v1416
      %v1466 = vsel %vm1434, %v1433, %v1417
      %v1467 = vsel %vm1400, 1, 0
      %v1468 = vsel %vm1401, 1, 0
      %vm1469 = vcmp.eq.s32.totalorder %v1467, 1
      %vm1470 = vcmp.eq.s32.totalorder %v1468, 1
      %v1471 = vsel %vm1469, %v1451, 0.0
      %v1472 = vsel %vm1470, %v1435, 0.0
      %v1473 = vsel %vm1469, %v1452, 0.0
      %v1474 = vsel %vm1470, %v1436, 0.0
      %v1475 = vsel %vm1469, %v1453, 0.0
      %v1476 = vsel %vm1470, %v1437, 0.0
      %v1477 = vsel %vm1469, %v1454, 0.0
      %v1478 = vsel %vm1470, %v1438, 0.0
      %v1479 = vsel %vm1469, %v1455, 0.0
      %v1480 = vsel %vm1470, %v1439, 0.0
      %v1481 = vsel %vm1469, %v1456, 0.0
      %v1482 = vsel %vm1470, %v1440, 0.0
      %v1483 = vsel %vm1469, %v1457, 0.0
      %v1484 = vsel %vm1470, %v1441, 0.0
      %v1485 = vsel %vm1469, %v1458, 0.0
      %v1486 = vsel %vm1470, %v1442, 0.0
      %v1487 = vsel %vm1469, %v1459, 0.0
      %v1488 = vsel %vm1470, %v1443, 0.0
      %v1489 = vsel %vm1469, %v1460, 0.0
      %v1490 = vsel %vm1470, %v1444, 0.0
      %v1491 = vsel %vm1469, %v1461, 0.0
      %v1492 = vsel %vm1470, %v1445, 0.0
      %v1493 = vsel %vm1469, %v1462, 0.0
      %v1494 = vsel %vm1470, %v1446, 0.0
      %v1495 = vsel %vm1469, %v1463, 0.0
      %v1496 = vsel %vm1470, %v1447, 0.0
      %v1497 = vsel %vm1469, %v1464, 0.0
      %v1498 = vsel %vm1470, %v1448, 0.0
      %v1499 = vsel %vm1469, %v1465, 0.0
      %v1500 = vsel %vm1470, %v1449, 0.0
      %v1501 = vsel %vm1469, %v1466, 0.0
      %v1502 = vsel %vm1470, %v1450, 0.0
      %vm1503 = vcmp.lt.s32.totalorder %v1398, 15
      %vm1504 = vcmp.lt.s32.totalorder %v1399, 15
      %v1505 = vrot.slane %v1365, 1
      %v1506 = vrot.slane %v1367, 1
      %v1507 = vrot.slane %v1369, 1
      %v1508 = vrot.slane %v1371, 1
      %v1509 = vrot.slane %v1373, 1
      %v1510 = vrot.slane %v1375, 1
      %v1511 = vrot.slane %v1377, 1
      %v1512 = vrot.slane %v1379, 1
      %v1513 = vrot.slane %v1381, 1
      %v1514 = vrot.slane %v1383, 1
      %v1515 = vrot.slane %v1385, 1
      %v1516 = vrot.slane %v1387, 1
      %v1517 = vrot.slane %v1389, 1
      %v1518 = vrot.slane %v1391, 1
      %v1519 = vrot.slane %v1393, 1
      %v1520 = vrot.slane %v1395, 1
      %v1521 = vrot.slane %v1366, 1
      %v1522 = vrot.slane %v1368, 1
      %v1523 = vrot.slane %v1370, 1
      %v1524 = vrot.slane %v1372, 1
      %v1525 = vrot.slane %v1374, 1
      %v1526 = vrot.slane %v1376, 1
      %v1527 = vrot.slane %v1378, 1
      %v1528 = vrot.slane %v1380, 1
      %v1529 = vrot.slane %v1382, 1
      %v1530 = vrot.slane %v1384, 1
      %v1531 = vrot.slane %v1386, 1
      %v1532 = vrot.slane %v1388, 1
      %v1533 = vrot.slane %v1390, 1
      %v1534 = vrot.slane %v1392, 1
      %v1535 = vrot.slane %v1394, 1
      %v1536 = vrot.slane %v1396, 1
      %vm1537 = vcmp.lt.s32.totalorder %v1398, 7
      %v1538 = vsel %vm1537, %v1505, %v1521
      %v1539 = vsel %vm1537, %v1506, %v1522
      %v1540 = vsel %vm1537, %v1507, %v1523
      %v1541 = vsel %vm1537, %v1508, %v1524
      %v1542 = vsel %vm1537, %v1509, %v1525
      %v1543 = vsel %vm1537, %v1510, %v1526
      %v1544 = vsel %vm1537, %v1511, %v1527
      %v1545 = vsel %vm1537, %v1512, %v1528
      %v1546 = vsel %vm1537, %v1513, %v1529
      %v1547 = vsel %vm1537, %v1514, %v1530
      %v1548 = vsel %vm1537, %v1515, %v1531
      %v1549 = vsel %vm1537, %v1516, %v1532
      %v1550 = vsel %vm1537, %v1517, %v1533
      %v1551 = vsel %vm1537, %v1518, %v1534
      %v1552 = vsel %vm1537, %v1519, %v1535
      %v1553 = vsel %vm1537, %v1520, %v1536
      %v1554 = vsel %vm1537, %v1521, %v1505
      %v1555 = vsel %vm1537, %v1522, %v1506
      %v1556 = vsel %vm1537, %v1523, %v1507
      %v1557 = vsel %vm1537, %v1524, %v1508
      %v1558 = vsel %vm1537, %v1525, %v1509
      %v1559 = vsel %vm1537, %v1526, %v1510
      %v1560 = vsel %vm1537, %v1527, %v1511
      %v1561 = vsel %vm1537, %v1528, %v1512
      %v1562 = vsel %vm1537, %v1529, %v1513
      %v1563 = vsel %vm1537, %v1530, %v1514
      %v1564 = vsel %vm1537, %v1531, %v1515
      %v1565 = vsel %vm1537, %v1532, %v1516
      %v1566 = vsel %vm1537, %v1533, %v1517
      %v1567 = vsel %vm1537, %v1534, %v1518
      %v1568 = vsel %vm1537, %v1535, %v1519
      %v1569 = vsel %vm1537, %v1536, %v1520
      %v1570 = vsel %vm1503, 1, 0
      %v1571 = vsel %vm1504, 1, 0
      %vm1572 = vcmp.eq.s32.totalorder %v1570, 1
      %vm1573 = vcmp.eq.s32.totalorder %v1571, 1
      %v1574 = vsel %vm1572, %v1538, 0.0
      %v1575 = vsel %vm1573, %v1554, 0.0
      %v1576 = vsel %vm1572, %v1539, 0.0
      %v1577 = vsel %vm1573, %v1555, 0.0
      %v1578 = vsel %vm1572, %v1540, 0.0
      %v1579 = vsel %vm1573, %v1556, 0.0
      %v1580 = vsel %vm1572, %v1541, 0.0
      %v1581 = vsel %vm1573, %v1557, 0.0
      %v1582 = vsel %vm1572, %v1542, 0.0
      %v1583 = vsel %vm1573, %v1558, 0.0
      %v1584 = vsel %vm1572, %v1543, 0.0
      %v1585 = vsel %vm1573, %v1559, 0.0
      %v1586 = vsel %vm1572, %v1544, 0.0
      %v1587 = vsel %vm1573, %v1560, 0.0
      %v1588 = vsel %vm1572, %v1545, 0.0
      %v1589 = vsel %vm1573, %v1561, 0.0
      %v1590 = vsel %vm1572, %v1546, 0.0
      %v1591 = vsel %vm1573, %v1562, 0.0
      %v1592 = vsel %vm1572, %v1547, 0.0
      %v1593 = vsel %vm1573, %v1563, 0.0
      %v1594 = vsel %vm1572, %v1548, 0.0
      %v1595 = vsel %vm1573, %v1564, 0.0
      %v1596 = vsel %vm1572, %v1549, 0.0
      %v1597 = vsel %vm1573, %v1565, 0.0
      %v1598 = vsel %vm1572, %v1550, 0.0
      %v1599 = vsel %vm1573, %v1566, 0.0
      %v1600 = vsel %vm1572, %v1551, 0.0
      %v1601 = vsel %vm1573, %v1567, 0.0
      %v1602 = vsel %vm1572, %v1552, 0.0
      %v1603 = vsel %vm1573, %v1568, 0.0
      %v1604 = vsel %vm1572, %v1553, 0.0
      %v1605 = vsel %vm1573, %v1569, 0.0
      %v1606 = vadd.f32 %v1471, %v1193
      %v1607 = vadd.f32 %v1472, %v1194
      %v1608 = vadd.f32 %v1473, %v1195
      %v1609 = vadd.f32 %v1474, %v1196
      %v1610 = vadd.f32 %v1475, %v1197
      %v1611 = vadd.f32 %v1476, %v1198
      %v1612 = vadd.f32 %v1477, %v1199
      %v1613 = vadd.f32 %v1478, %v1200
      %v1614 = vadd.f32 %v1479, %v1201
      %v1615 = vadd.f32 %v1480, %v1202
      %v1616 = vadd.f32 %v1481, %v1203
      %v1617 = vadd.f32 %v1482, %v1204
      %v1618 = vadd.f32 %v1483, %v1205
      %v1619 = vadd.f32 %v1484, %v1206
      %v1620 = vadd.f32 %v1485, %v1207
      %v1621 = vadd.f32 %v1486, %v1208
      %v1622 = vadd.f32 %v1487, %v1209
      %v1623 = vadd.f32 %v1488, %v1210
      %v1624 = vadd.f32 %v1489, %v1211
      %v1625 = vadd.f32 %v1490, %v1212
      %v1626 = vadd.f32 %v1491, %v1213
      %v1627 = vadd.f32 %v1492, %v1214
      %v1628 = vadd.f32 %v1493, %v1215
      %v1629 = vadd.f32 %v1494, %v1216
      %v1630 = vadd.f32 %v1495, %v1217
      %v1631 = vadd.f32 %v1496, %v1218
      %v1632 = vadd.f32 %v1497, %v1219
      %v1633 = vadd.f32 %v1498, %v1220
      %v1634 = vadd.f32 %v1499, %v1221
      %v1635 = vadd.f32 %v1500, %v1222
      %v1636 = vadd.f32 %v1501, %v1223
      %v1637 = vadd.f32 %v1502, %v1224
      %v1638 = vadd.f32 %v1606, %v1574
      %v1639 = vadd.f32 %v1607, %v1575
      %v1640 = vadd.f32 %v1608, %v1576
      %v1641 = vadd.f32 %v1609, %v1577
      %v1642 = vadd.f32 %v1610, %v1578
      %v1643 = vadd.f32 %v1611, %v1579
      %v1644 = vadd.f32 %v1612, %v1580
      %v1645 = vadd.f32 %v1613, %v1581
      %v1646 = vadd.f32 %v1614, %v1582
      %v1647 = vadd.f32 %v1615, %v1583
      %v1648 = vadd.f32 %v1616, %v1584
      %v1649 = vadd.f32 %v1617, %v1585
      %v1650 = vadd.f32 %v1618, %v1586
      %v1651 = vadd.f32 %v1619, %v1587
      %v1652 = vadd.f32 %v1620, %v1588
      %v1653 = vadd.f32 %v1621, %v1589
      %v1654 = vadd.f32 %v1622, %v1590
      %v1655 = vadd.f32 %v1623, %v1591
      %v1656 = vadd.f32 %v1624, %v1592
      %v1657 = vadd.f32 %v1625, %v1593
      %v1658 = vadd.f32 %v1626, %v1594
      %v1659 = vadd.f32 %v1627, %v1595
      %v1660 = vadd.f32 %v1628, %v1596
      %v1661 = vadd.f32 %v1629, %v1597
      %v1662 = vadd.f32 %v1630, %v1598
      %v1663 = vadd.f32 %v1631, %v1599
      %v1664 = vadd.f32 %v1632, %v1600
      %v1665 = vadd.f32 %v1633, %v1601
      %v1666 = vadd.f32 %v1634, %v1602
      %v1667 = vadd.f32 %v1635, %v1603
      %v1668 = vadd.f32 %v1636, %v1604
      %v1669 = vadd.f32 %v1637, %v1605
      %v1670 = vld [vmem:[%s5] sm:$0x1]
      %v1672 = vlaneseq
      %v1673 = vshrl.u32 %v1672, 7
      %v1674 = vsub.s32 0, %v1673
      %v1675 = vrot.slane %v1670, %v1674
      %v1677 = vmul.f32 %v1638, %v1675
      %v1678 = vmul.f32 %v1639, %v1675
      %v1679 = vmul.f32 %v1640, %v1675
      %v1680 = vmul.f32 %v1641, %v1675
      %v1681 = vmul.f32 %v1642, %v1675
      %v1682 = vmul.f32 %v1643, %v1675
      %v1683 = vmul.f32 %v1644, %v1675
      %v1684 = vmul.f32 %v1645, %v1675
      %v1685 = vmul.f32 %v1646, %v1675
      %v1686 = vmul.f32 %v1647, %v1675
      %v1687 = vmul.f32 %v1648, %v1675
      %v1688 = vmul.f32 %v1649, %v1675
      %v1689 = vmul.f32 %v1650, %v1675
      %v1690 = vmul.f32 %v1651, %v1675
      %v1691 = vmul.f32 %v1652, %v1675
      %v1692 = vmul.f32 %v1653, %v1675
      %v1693 = vmul.f32 %v1654, %v1675
      %v1694 = vmul.f32 %v1655, %v1675
      %v1695 = vmul.f32 %v1656, %v1675
      %v1696 = vmul.f32 %v1657, %v1675
      %v1697 = vmul.f32 %v1658, %v1675
      %v1698 = vmul.f32 %v1659, %v1675
      %v1699 = vmul.f32 %v1660, %v1675
      %v1700 = vmul.f32 %v1661, %v1675
      %v1701 = vmul.f32 %v1662, %v1675
      %v1702 = vmul.f32 %v1663, %v1675
      %v1703 = vmul.f32 %v1664, %v1675
      %v1704 = vmul.f32 %v1665, %v1675
      %v1705 = vmul.f32 %v1666, %v1675
      %v1706 = vmul.f32 %v1667, %v1675
      %v1707 = vmul.f32 %v1668, %v1675
      %v1708 = vmul.f32 %v1669, %v1675
      %v1709 = vld [vmem:[%s6] sm:$0x1]
      %v1711 = vlaneseq
      %v1712 = vshrl.u32 %v1711, 7
      %v1713 = vsub.s32 0, %v1712
      %v1714 = vrot.slane %v1709, %v1713
      %v1716 = vadd.f32 %v1677, %v1714
      %v1717 = vadd.f32 %v1678, %v1714
      %v1718 = vadd.f32 %v1679, %v1714
      %v1719 = vadd.f32 %v1680, %v1714
      %v1720 = vadd.f32 %v1681, %v1714
      %v1721 = vadd.f32 %v1682, %v1714
      %v1722 = vadd.f32 %v1683, %v1714
      %v1723 = vadd.f32 %v1684, %v1714
      %v1724 = vadd.f32 %v1685, %v1714
      %v1725 = vadd.f32 %v1686, %v1714
      %v1726 = vadd.f32 %v1687, %v1714
      %v1727 = vadd.f32 %v1688, %v1714
      %v1728 = vadd.f32 %v1689, %v1714
      %v1729 = vadd.f32 %v1690, %v1714
      %v1730 = vadd.f32 %v1691, %v1714
      %v1731 = vadd.f32 %v1692, %v1714
      %v1732 = vadd.f32 %v1693, %v1714
      %v1733 = vadd.f32 %v1694, %v1714
      %v1734 = vadd.f32 %v1695, %v1714
      %v1735 = vadd.f32 %v1696, %v1714
      %v1736 = vadd.f32 %v1697, %v1714
      %v1737 = vadd.f32 %v1698, %v1714
      %v1738 = vadd.f32 %v1699, %v1714
      %v1739 = vadd.f32 %v1700, %v1714
      %v1740 = vadd.f32 %v1701, %v1714
      %v1741 = vadd.f32 %v1702, %v1714
      %v1742 = vadd.f32 %v1703, %v1714
      %v1743 = vadd.f32 %v1704, %v1714
      %v1744 = vadd.f32 %v1705, %v1714
      %v1745 = vadd.f32 %v1706, %v1714
      %v1746 = vadd.f32 %v1707, %v1714
      %v1747 = vadd.f32 %v1708, %v1714
      %v1748 = vmax.f32 %v1716, 0.0
      %v1749 = vmax.f32 %v1717, 0.0
      %v1750 = vmax.f32 %v1718, 0.0
      %v1751 = vmax.f32 %v1719, 0.0
      %v1752 = vmax.f32 %v1720, 0.0
      %v1753 = vmax.f32 %v1721, 0.0
      %v1754 = vmax.f32 %v1722, 0.0
      %v1755 = vmax.f32 %v1723, 0.0
      %v1756 = vmax.f32 %v1724, 0.0
      %v1757 = vmax.f32 %v1725, 0.0
      %v1758 = vmax.f32 %v1726, 0.0
      %v1759 = vmax.f32 %v1727, 0.0
      %v1760 = vmax.f32 %v1728, 0.0
      %v1761 = vmax.f32 %v1729, 0.0
      %v1762 = vmax.f32 %v1730, 0.0
      %v1763 = vmax.f32 %v1731, 0.0
      %v1764 = vmax.f32 %v1732, 0.0
      %v1765 = vmax.f32 %v1733, 0.0
      %v1766 = vmax.f32 %v1734, 0.0
      %v1767 = vmax.f32 %v1735, 0.0
      %v1768 = vmax.f32 %v1736, 0.0
      %v1769 = vmax.f32 %v1737, 0.0
      %v1770 = vmax.f32 %v1738, 0.0
      %v1771 = vmax.f32 %v1739, 0.0
      %v1772 = vmax.f32 %v1740, 0.0
      %v1773 = vmax.f32 %v1741, 0.0
      %v1774 = vmax.f32 %v1742, 0.0
      %v1775 = vmax.f32 %v1743, 0.0
      %v1776 = vmax.f32 %v1744, 0.0
      %v1777 = vmax.f32 %v1745, 0.0
      %v1778 = vmax.f32 %v1746, 0.0
      %v1779 = vmax.f32 %v1747, 0.0
      %v1780 = vld [vmem:[%s7] sm:$0xff]
      %v1781 = vld [vmem:[%s7 + $0x8] sm:$0xff]
      %v1782 = vld [vmem:[%s7 + $0x10] sm:$0xff]
      %v1783 = vld [vmem:[%s7 + $0x18] sm:$0xff]
      %v1784 = vld [vmem:[%s7 + $0x20] sm:$0xff]
      %v1785 = vld [vmem:[%s7 + $0x28] sm:$0xff]
      %v1786 = vld [vmem:[%s7 + $0x30] sm:$0xff]
      %v1787 = vld [vmem:[%s7 + $0x38] sm:$0xff]
      %v1788 = vld [vmem:[%s7 + $0x40] sm:$0xff]
      %v1789 = vld [vmem:[%s7 + $0x48] sm:$0xff]
      %v1790 = vld [vmem:[%s7 + $0x50] sm:$0xff]
      %v1791 = vld [vmem:[%s7 + $0x58] sm:$0xff]
      %v1792 = vld [vmem:[%s7 + $0x60] sm:$0xff]
      %v1793 = vld [vmem:[%s7 + $0x68] sm:$0xff]
      %v1794 = vld [vmem:[%s7 + $0x70] sm:$0xff]
      %v1795 = vld [vmem:[%s7 + $0x78] sm:$0xff]
      %1796 = vmatprep.subr.mxu0 0.0
      %1797 = vmatpush1.msra.mxu0 %v1780
      %1798 = vmatprep.subr.mxu0 0.0
      %1799 = vmatpush1.msra.mxu0 %v1781
      %1800 = vmatprep.subr.mxu0 0.0
      %1801 = vmatpush1.msra.mxu0 %v1782
      %1802 = vmatprep.subr.mxu0 0.0
      %1803 = vmatpush1.msra.mxu0 %v1783
      %1804 = vmatprep.subr.mxu0 0.0
      %1805 = vmatpush1.msra.mxu0 %v1784
      %1806 = vmatprep.subr.mxu0 0.0
      %1807 = vmatpush1.msra.mxu0 %v1785
      %1808 = vmatprep.subr.mxu0 0.0
      %1809 = vmatpush1.msra.mxu0 %v1786
      %1810 = vmatprep.subr.mxu0 0.0
      %1811 = vmatpush1.msra.mxu0 %v1787
      %1812 = vmatprep.subr.mxu0 0.0
      %1813 = vmatpush1.msra.mxu0 %v1788
      %1814 = vmatprep.subr.mxu0 0.0
      %1815 = vmatpush1.msra.mxu0 %v1789
      %1816 = vmatprep.subr.mxu0 0.0
      %1817 = vmatpush1.msra.mxu0 %v1790
      %1818 = vmatprep.subr.mxu0 0.0
      %1819 = vmatpush1.msra.mxu0 %v1791
      %1820 = vmatprep.subr.mxu0 0.0
      %1821 = vmatpush1.msra.mxu0 %v1792
      %1822 = vmatprep.subr.mxu0 0.0
      %1823 = vmatpush1.msra.mxu0 %v1793
      %1824 = vmatprep.subr.mxu0 0.0
      %1825 = vmatpush1.msra.mxu0 %v1794
      %1826 = vmatprep.subr.mxu0 0.0
      %1827 = vmatpush1.msra.mxu0 %v1795
      %1828 = vmatprep.subr.mxu0 0.0
      %1829 = vmatpush1.msra.mxu0 0.0
      %1830 = vmatprep.subr.mxu0 0.0
      %1831 = vmatpush1.msra.mxu0 0.0
      %1832 = vmatprep.subr.mxu0 0.0
      %1833 = vmatpush1.msra.mxu0 0.0
      %1834 = vmatprep.subr.mxu0 0.0
      %1835 = vmatpush1.msra.mxu0 0.0
      %1836 = vmatprep.subr.mxu0 0.0
      %1837 = vmatpush1.msra.mxu0 0.0
      %1838 = vmatprep.subr.mxu0 0.0
      %1839 = vmatpush1.msra.mxu0 0.0
      %1840 = vmatprep.subr.mxu0 0.0
      %1841 = vmatpush1.msra.mxu0 0.0
      %1842 = vmatprep.subr.mxu0 0.0
      %1843 = vmatpush1.msra.mxu0 0.0
      %1844 = vmatprep.subr.mxu0 0.0
      %1845 = vmatpush1.msra.mxu0 0.0
      %1846 = vmatprep.subr.mxu0 0.0
      %1847 = vmatpush1.msra.mxu0 0.0
      %1848 = vmatprep.subr.mxu0 0.0
      %1849 = vmatpush1.msra.mxu0 0.0
      %1850 = vmatprep.subr.mxu0 0.0
      %1851 = vmatpush1.msra.mxu0 0.0
      %1852 = vmatprep.subr.mxu0 0.0
      %1853 = vmatpush1.msra.mxu0 0.0
      %1854 = vmatprep.subr.mxu0 0.0
      %1855 = vmatpush1.msra.mxu0 0.0
      %1856 = vmatprep.subr.mxu0 0.0
      %1857 = vmatpush1.msra.mxu0 0.0
      %1858 = vmatprep.subr.mxu0 0.0
      %1859 = vmatpush1.msra.mxu0 0.0
      %1860 = vmatprep.mubr.f32.mxu0 0.0
      %1861 = vmatmul.mubr.f32.gmra.mrb[0].mxu0 %v1748
      %v1862 = vpop.f32.mrb[0].mxu0
      %v1863 = vadd.f32 0.0, %v1862
      %v1864 = vpop.f32.mrb[0].mxu0
      %1865 = vmatprep.mubr.f32.mxu0 0.0
      %1866 = vmatmul.mubr.f32.gmra.mrb[0].mxu0 %v1749
      %v1867 = vpop.f32.mrb[0].mxu0
      %v1868 = vadd.f32 0.0, %v1867
      %v1869 = vpop.f32.mrb[0].mxu0
      %1870 = vmatprep.mubr.f32.mxu0 0.0
      %1871 = vmatmul.mubr.f32.gmra.mrb[0].mxu0 %v1750
      %v1872 = vpop.f32.mrb[0].mxu0
      %v1873 = vadd.f32 0.0, %v1872
      %v1874 = vpop.f32.mrb[0].mxu0
      %1875 = vmatprep.mubr.f32.mxu0 0.0
      %1876 = vmatmul.mubr.f32.gmra.mrb[0].mxu0 %v1751
      %v1877 = vpop.f32.mrb[0].mxu0
      %v1878 = vadd.f32 0.0, %v1877
      %v1879 = vpop.f32.mrb[0].mxu0
      %1880 = vmatprep.mubr.f32.mxu0 0.0
      %1881 = vmatmul.mubr.f32.gmra.mrb[0].mxu0 %v1752
      %v1882 = vpop.f32.mrb[0].mxu0
      %v1883 = vadd.f32 0.0, %v1882
      %v1884 = vpop.f32.mrb[0].mxu0
      %1885 = vmatprep.mubr.f32.mxu0 0.0
      %1886 = vmatmul.mubr.f32.gmra.mrb[0].mxu0 %v1753
      %v1887 = vpop.f32.mrb[0].mxu0
      %v1888 = vadd.f32 0.0, %v1887
      %v1889 = vpop.f32.mrb[0].mxu0
      %1890 = vmatprep.mubr.f32.mxu0 0.0
      %1891 = vmatmul.mubr.f32.gmra.mrb[0].mxu0 %v1754
      %v1892 = vpop.f32.mrb[0].mxu0
      %v1893 = vadd.f32 0.0, %v1892
      %v1894 = vpop.f32.mrb[0].mxu0
      %1895 = vmatprep.mubr.f32.mxu0 0.0
      %1896 = vmatmul.mubr.f32.gmra.mrb[0].mxu0 %v1755
      %v1897 = vpop.f32.mrb[0].mxu0
      %v1898 = vadd.f32 0.0, %v1897
      %v1899 = vpop.f32.mrb[0].mxu0
      %1900 = vmatprep.mubr.f32.mxu0 0.0
      %1901 = vmatmul.mubr.f32.gmra.mrb[0].mxu0 %v1756
      %v1902 = vpop.f32.mrb[0].mxu0
      %v1903 = vadd.f32 0.0, %v1902
      %v1904 = vpop.f32.mrb[0].mxu0
      %1905 = vmatprep.mubr.f32.mxu0 0.0
      %1906 = vmatmul.mubr.f32.gmra.mrb[0].mxu0 %v1757
      %v1907 = vpop.f32.mrb[0].mxu0
      %v1908 = vadd.f32 0.0, %v1907
      %v1909 = vpop.f32.mrb[0].mxu0
      %1910 = vmatprep.mubr.f32.mxu0 0.0
      %1911 = vmatmul.mubr.f32.gmra.mrb[0].mxu0 %v1758
      %v1912 = vpop.f32.mrb[0].mxu0
      %v1913 = vadd.f32 0.0, %v1912
      %v1914 = vpop.f32.mrb[0].mxu0
      %1915 = vmatprep.mubr.f32.mxu0 0.0
      %1916 = vmatmul.mubr.f32.gmra.mrb[0].mxu0 %v1759
      %v1917 = vpop.f32.mrb[0].mxu0
      %v1918 = vadd.f32 0.0, %v1917
      %v1919 = vpop.f32.mrb[0].mxu0
      %1920 = vmatprep.mubr.f32.mxu0 0.0
      %1921 = vmatmul.mubr.f32.gmra.mrb[0].mxu0 %v1760
      %v1922 = vpop.f32.mrb[0].mxu0
      %v1923 = vadd.f32 0.0, %v1922
      %v1924 = vpop.f32.mrb[0].mxu0
      %1925 = vmatprep.mubr.f32.mxu0 0.0
      %1926 = vmatmul.mubr.f32.gmra.mrb[0].mxu0 %v1761
      %v1927 = vpop.f32.mrb[0].mxu0
      %v1928 = vadd.f32 0.0, %v1927
      %v1929 = vpop.f32.mrb[0].mxu0
      %1930 = vmatprep.mubr.f32.mxu0 0.0
      %1931 = vmatmul.mubr.f32.gmra.mrb[0].mxu0 %v1762
      %v1932 = vpop.f32.mrb[0].mxu0
      %v1933 = vadd.f32 0.0, %v1932
      %v1934 = vpop.f32.mrb[0].mxu0
      %1935 = vmatprep.mubr.f32.mxu0 0.0
      %1936 = vmatmul.mubr.f32.gmra.mrb[0].mxu0 %v1763
      %v1937 = vpop.f32.mrb[0].mxu0
      %v1938 = vadd.f32 0.0, %v1937
      %v1939 = vpop.f32.mrb[0].mxu0
      %1940 = vmatprep.mubr.f32.mxu0 0.0
      %1941 = vmatmul.mubr.f32.gmra.mrb[0].mxu0 %v1764
      %v1942 = vpop.f32.mrb[0].mxu0
      %v1943 = vadd.f32 0.0, %v1942
      %v1944 = vpop.f32.mrb[0].mxu0
      %1945 = vmatprep.mubr.f32.mxu0 0.0
      %1946 = vmatmul.mubr.f32.gmra.mrb[0].mxu0 %v1765
      %v1947 = vpop.f32.mrb[0].mxu0
      %v1948 = vadd.f32 0.0, %v1947
      %v1949 = vpop.f32.mrb[0].mxu0
      %1950 = vmatprep.mubr.f32.mxu0 0.0
      %1951 = vmatmul.mubr.f32.gmra.mrb[0].mxu0 %v1766
      %v1952 = vpop.f32.mrb[0].mxu0
      %v1953 = vadd.f32 0.0, %v1952
      %v1954 = vpop.f32.mrb[0].mxu0
      %1955 = vmatprep.mubr.f32.mxu0 0.0
      %1956 = vmatmul.mubr.f32.gmra.mrb[0].mxu0 %v1767
      %v1957 = vpop.f32.mrb[0].mxu0
      %v1958 = vadd.f32 0.0, %v1957
      %v1959 = vpop.f32.mrb[0].mxu0
      %1960 = vmatprep.mubr.f32.mxu0 0.0
      %1961 = vmatmul.mubr.f32.gmra.mrb[0].mxu0 %v1768
      %v1962 = vpop.f32.mrb[0].mxu0
      %v1963 = vadd.f32 0.0, %v1962
      %v1964 = vpop.f32.mrb[0].mxu0
      %1965 = vmatprep.mubr.f32.mxu0 0.0
      %1966 = vmatmul.mubr.f32.gmra.mrb[0].mxu0 %v1769
      %v1967 = vpop.f32.mrb[0].mxu0
      %v1968 = vadd.f32 0.0, %v1967
      %v1969 = vpop.f32.mrb[0].mxu0
      %1970 = vmatprep.mubr.f32.mxu0 0.0
      %1971 = vmatmul.mubr.f32.gmra.mrb[0].mxu0 %v1770
      %v1972 = vpop.f32.mrb[0].mxu0
      %v1973 = vadd.f32 0.0, %v1972
      %v1974 = vpop.f32.mrb[0].mxu0
      %1975 = vmatprep.mubr.f32.mxu0 0.0
      %1976 = vmatmul.mubr.f32.gmra.mrb[0].mxu0 %v1771
      %v1977 = vpop.f32.mrb[0].mxu0
      %v1978 = vadd.f32 0.0, %v1977
      %v1979 = vpop.f32.mrb[0].mxu0
      %1980 = vmatprep.mubr.f32.mxu0 0.0
      %1981 = vmatmul.mubr.f32.gmra.mrb[0].mxu0 %v1772
      %v1982 = vpop.f32.mrb[0].mxu0
      %v1983 = vadd.f32 0.0, %v1982
      %v1984 = vpop.f32.mrb[0].mxu0
      %1985 = vmatprep.mubr.f32.mxu0 0.0
      %1986 = vmatmul.mubr.f32.gmra.mrb[0].mxu0 %v1773
      %v1987 = vpop.f32.mrb[0].mxu0
      %v1988 = vadd.f32 0.0, %v1987
      %v1989 = vpop.f32.mrb[0].mxu0
      %1990 = vmatprep.mubr.f32.mxu0 0.0
      %1991 = vmatmul.mubr.f32.gmra.mrb[0].mxu0 %v1774
      %v1992 = vpop.f32.mrb[0].mxu0
      %v1993 = vadd.f32 0.0, %v1992
      %v1994 = vpop.f32.mrb[0].mxu0
      %1995 = vmatprep.mubr.f32.mxu0 0.0
      %1996 = vmatmul.mubr.f32.gmra.mrb[0].mxu0 %v1775
      %v1997 = vpop.f32.mrb[0].mxu0
      %v1998 = vadd.f32 0.0, %v1997
      %v1999 = vpop.f32.mrb[0].mxu0
      %2000 = vmatprep.mubr.f32.mxu0 0.0
      %2001 = vmatmul.mubr.f32.gmra.mrb[0].mxu0 %v1776
      %v2002 = vpop.f32.mrb[0].mxu0
      %v2003 = vadd.f32 0.0, %v2002
      %v2004 = vpop.f32.mrb[0].mxu0
      %2005 = vmatprep.mubr.f32.mxu0 0.0
      %2006 = vmatmul.mubr.f32.gmra.mrb[0].mxu0 %v1777
      %v2007 = vpop.f32.mrb[0].mxu0
      %v2008 = vadd.f32 0.0, %v2007
      %v2009 = vpop.f32.mrb[0].mxu0
      %2010 = vmatprep.mubr.f32.mxu0 0.0
      %2011 = vmatmul.mubr.f32.gmra.mrb[0].mxu0 %v1778
      %v2012 = vpop.f32.mrb[0].mxu0
      %v2013 = vadd.f32 0.0, %v2012
      %v2014 = vpop.f32.mrb[0].mxu0
      %2015 = vmatprep.mubr.f32.mxu0 0.0
      %2016 = vmatmul.mubr.f32.gmra.mrb[0].mxu0 %v1779
      %v2017 = vpop.f32.mrb[0].mxu0
      %v2018 = vadd.f32 0.0, %v2017
      %v2019 = vpop.f32.mrb[0].mxu0
      %2020 = vdwg.mxu0
      %v2021 = vld [vmem:[%s8] sm:$0x1]
      %v2023 = vlaneseq
      %v2024 = vshrl.u32 %v2023, 7
      %v2025 = vsub.s32 0, %v2024
      %v2026 = vrot.slane %v2021, %v2025
      %v2028 = vmul.f32 %v1863, %v2026
      %v2029 = vmul.f32 %v1868, %v2026
      %v2030 = vmul.f32 %v1873, %v2026
      %v2031 = vmul.f32 %v1878, %v2026
      %v2032 = vmul.f32 %v1883, %v2026
      %v2033 = vmul.f32 %v1888, %v2026
      %v2034 = vmul.f32 %v1893, %v2026
      %v2035 = vmul.f32 %v1898, %v2026
      %v2036 = vmul.f32 %v1903, %v2026
      %v2037 = vmul.f32 %v1908, %v2026
      %v2038 = vmul.f32 %v1913, %v2026
      %v2039 = vmul.f32 %v1918, %v2026
      %v2040 = vmul.f32 %v1923, %v2026
      %v2041 = vmul.f32 %v1928, %v2026
      %v2042 = vmul.f32 %v1933, %v2026
      %v2043 = vmul.f32 %v1938, %v2026
      %v2044 = vmul.f32 %v1943, %v2026
      %v2045 = vmul.f32 %v1948, %v2026
      %v2046 = vmul.f32 %v1953, %v2026
      %v2047 = vmul.f32 %v1958, %v2026
      %v2048 = vmul.f32 %v1963, %v2026
      %v2049 = vmul.f32 %v1968, %v2026
      %v2050 = vmul.f32 %v1973, %v2026
      %v2051 = vmul.f32 %v1978, %v2026
      %v2052 = vmul.f32 %v1983, %v2026
      %v2053 = vmul.f32 %v1988, %v2026
      %v2054 = vmul.f32 %v1993, %v2026
      %v2055 = vmul.f32 %v1998, %v2026
      %v2056 = vmul.f32 %v2003, %v2026
      %v2057 = vmul.f32 %v2008, %v2026
      %v2058 = vmul.f32 %v2013, %v2026
      %v2059 = vmul.f32 %v2018, %v2026
      %v2060 = vld [vmem:[%s9] sm:$0x1]
      %v2062 = vlaneseq
      %v2063 = vshrl.u32 %v2062, 7
      %v2064 = vsub.s32 0, %v2063
      %v2065 = vrot.slane %v2060, %v2064
      %v2067 = vadd.f32 %v2028, %v2065
      %v2068 = vadd.f32 %v2029, %v2065
      %v2069 = vadd.f32 %v2030, %v2065
      %v2070 = vadd.f32 %v2031, %v2065
      %v2071 = vadd.f32 %v2032, %v2065
      %v2072 = vadd.f32 %v2033, %v2065
      %v2073 = vadd.f32 %v2034, %v2065
      %v2074 = vadd.f32 %v2035, %v2065
      %v2075 = vadd.f32 %v2036, %v2065
      %v2076 = vadd.f32 %v2037, %v2065
      %v2077 = vadd.f32 %v2038, %v2065
      %v2078 = vadd.f32 %v2039, %v2065
      %v2079 = vadd.f32 %v2040, %v2065
      %v2080 = vadd.f32 %v2041, %v2065
      %v2081 = vadd.f32 %v2042, %v2065
      %v2082 = vadd.f32 %v2043, %v2065
      %v2083 = vadd.f32 %v2044, %v2065
      %v2084 = vadd.f32 %v2045, %v2065
      %v2085 = vadd.f32 %v2046, %v2065
      %v2086 = vadd.f32 %v2047, %v2065
      %v2087 = vadd.f32 %v2048, %v2065
      %v2088 = vadd.f32 %v2049, %v2065
      %v2089 = vadd.f32 %v2050, %v2065
      %v2090 = vadd.f32 %v2051, %v2065
      %v2091 = vadd.f32 %v2052, %v2065
      %v2092 = vadd.f32 %v2053, %v2065
      %v2093 = vadd.f32 %v2054, %v2065
      %v2094 = vadd.f32 %v2055, %v2065
      %v2095 = vadd.f32 %v2056, %v2065
      %v2096 = vadd.f32 %v2057, %v2065
      %v2097 = vadd.f32 %v2058, %v2065
      %v2098 = vadd.f32 %v2059, %v2065
      %v2099 = vadd.f32 %v2067, %v360
      %v2100 = vadd.f32 %v2068, %v361
      %v2101 = vadd.f32 %v2069, %v362
      %v2102 = vadd.f32 %v2070, %v363
      %v2103 = vadd.f32 %v2071, %v364
      %v2104 = vadd.f32 %v2072, %v365
      %v2105 = vadd.f32 %v2073, %v366
      %v2106 = vadd.f32 %v2074, %v367
      %v2107 = vadd.f32 %v2075, %v368
      %v2108 = vadd.f32 %v2076, %v369
      %v2109 = vadd.f32 %v2077, %v370
      %v2110 = vadd.f32 %v2078, %v371
      %v2111 = vadd.f32 %v2079, %v372
      %v2112 = vadd.f32 %v2080, %v373
      %v2113 = vadd.f32 %v2081, %v374
      %v2114 = vadd.f32 %v2082, %v375
      %v2115 = vadd.f32 %v2083, %v376
      %v2116 = vadd.f32 %v2084, %v377
      %v2117 = vadd.f32 %v2085, %v378
      %v2118 = vadd.f32 %v2086, %v379
      %v2119 = vadd.f32 %v2087, %v380
      %v2120 = vadd.f32 %v2088, %v381
      %v2121 = vadd.f32 %v2089, %v382
      %v2122 = vadd.f32 %v2090, %v383
      %v2123 = vadd.f32 %v2091, %v384
      %v2124 = vadd.f32 %v2092, %v385
      %v2125 = vadd.f32 %v2093, %v386
      %v2126 = vadd.f32 %v2094, %v387
      %v2127 = vadd.f32 %v2095, %v388
      %v2128 = vadd.f32 %v2096, %v389
      %v2129 = vadd.f32 %v2097, %v390
      %v2130 = vadd.f32 %v2098, %v391
      %2131 = vst [vmem:[%s359] sm:$0xff] %v2099
      %2132 = vst [vmem:[%s359 + $0x8] sm:$0xff] %v2100
      %2133 = vst [vmem:[%s359 + $0x10] sm:$0xff] %v2101
      %2134 = vst [vmem:[%s359 + $0x18] sm:$0xff] %v2102
      %2135 = vst [vmem:[%s359 + $0x20] sm:$0xff] %v2103
      %2136 = vst [vmem:[%s359 + $0x28] sm:$0xff] %v2104
      %2137 = vst [vmem:[%s359 + $0x30] sm:$0xff] %v2105
      %2138 = vst [vmem:[%s359 + $0x38] sm:$0xff] %v2106
      %2139 = vst [vmem:[%s359 + $0x40] sm:$0xff] %v2107
      %2140 = vst [vmem:[%s359 + $0x48] sm:$0xff] %v2108
      %2141 = vst [vmem:[%s359 + $0x50] sm:$0xff] %v2109
      %2142 = vst [vmem:[%s359 + $0x58] sm:$0xff] %v2110
      %2143 = vst [vmem:[%s359 + $0x60] sm:$0xff] %v2111
      %2144 = vst [vmem:[%s359 + $0x68] sm:$0xff] %v2112
      %2145 = vst [vmem:[%s359 + $0x70] sm:$0xff] %v2113
      %2146 = vst [vmem:[%s359 + $0x78] sm:$0xff] %v2114
      %2147 = vst [vmem:[%s359 + $0x80] sm:$0xff] %v2115
      %2148 = vst [vmem:[%s359 + $0x88] sm:$0xff] %v2116
      %2149 = vst [vmem:[%s359 + $0x90] sm:$0xff] %v2117
      %2150 = vst [vmem:[%s359 + $0x98] sm:$0xff] %v2118
      %2151 = vst [vmem:[%s359 + $0xa0] sm:$0xff] %v2119
      %2152 = vst [vmem:[%s359 + $0xa8] sm:$0xff] %v2120
      %2153 = vst [vmem:[%s359 + $0xb0] sm:$0xff] %v2121
      %2154 = vst [vmem:[%s359 + $0xb8] sm:$0xff] %v2122
      %2155 = vst [vmem:[%s359 + $0xc0] sm:$0xff] %v2123
      %2156 = vst [vmem:[%s359 + $0xc8] sm:$0xff] %v2124
      %2157 = vst [vmem:[%s359 + $0xd0] sm:$0xff] %v2125
      %2158 = vst [vmem:[%s359 + $0xd8] sm:$0xff] %v2126
      %2159 = vst [vmem:[%s359 + $0xe0] sm:$0xff] %v2127
      %2160 = vst [vmem:[%s359 + $0xe8] sm:$0xff] %v2128
      %2161 = vst [vmem:[%s359 + $0xf0] sm:$0xff] %v2129
      %2162 = vst [vmem:[%s359 + $0xf8] sm:$0xff] %v2130
      %p2163 = scmp.lt.s32.totalorder %s21, 1
      %s2164 = scalar_select %p2163, %s21, 1
      %s2165 = smul.addr %s2164, 32
      %s2166 = smul.addr %s2165, 8
      %s2167 = scalar_lea.vmem %s10, %s2166
      // Predicated region
      $region61: #{inverted_residual_forward.1} parent=59 // pred_check
        %p2168 = pneg %p254
      $region62: #{inverted_residual_forward.1} parent=59 // pred_check_branch
        %2170 = sbr.rel (%p2168) target = $region64
      $region63: #{inverted_residual_forward.1} parent=59 // pred_region
        _
      $region64: #{inverted_residual_forward.1} parent=59 // pred_fallthru
        _
    $region60: #{inverted_residual_forward.1} parent=5 // pred_fallthru
      _
    %p2171 = scmp.le.s32.totalorder 2, %s16
    // Predicated region
    $region65: #{inverted_residual_forward.1} parent=5 // pred_check
      %p2172 = pneg %p2171
    $region66: #{inverted_residual_forward.1} parent=5 // pred_check_branch
      %2174 = sbr.rel (%p2172) target = $region68
    $region67: #{inverted_residual_forward.1} parent=5 // pred_region
      %s2175 = ssub.s32 %s16, 2
      // Predicated region
      $region69: #{inverted_residual_forward.1} parent=67 // pred_check
        %p2176 = pneg %p260
      $region70: #{inverted_residual_forward.1} parent=67 // pred_check_branch
        %2178 = sbr.rel (%p2176) target = $region72
      $region71: #{inverted_residual_forward.1} parent=67 // pred_region
        %p2179 = scmp.lt.s32.totalorder %s22, 1
        %s2180 = scalar_select %p2179, %s22, 1
        %s2181 = smul.addr %s2180, 32
        %s2182 = smul.addr %s2181, 8
        %s2183 = scalar_lea.vmem %s10, %s2182
      $region72: #{inverted_residual_forward.1} parent=67 // pred_fallthru
        _
    $region68: #{inverted_residual_forward.1} parent=5 // pred_fallthru
      _
  $region6: #{inverted_residual_forward.1} parent=0 // loop_footer
    %s20 = sadd.s32 1, %s16
  $region7: #{inverted_residual_forward.1} parent=0 // loop_footer_branch
    %15 = sbr.rel target = $region3
  $region8: #{inverted_residual_forward.1} parent=0 // loop_exit
    _

</llo_original>
